<compile_context>
chip_gen: v7x
topology: tpu7x:2x2x1
jax: 0.10.0
libtpu: 0.0.40
codegen_flags: <defaults>
</compile_context>

<pallas_src>
import math

import jax
import jax.numpy as jnp
from jax import lax
from jax.experimental import pallas as pl
from jax.experimental.pallas import tpu as pltpu


SUBLANE = 8                        # batch elements packed per sublane group
MATMUL_DTYPE = jnp.bfloat16        # MXU input dtype (recurrence stays f32)


def _pick_tile(dim, target, align=1):
    """Largest tile <= target that divides `dim` and is a multiple of `align`.
    Falls back to the full dim (always a legal block size)."""
    if dim <= target:
        return dim
    t = (target // align) * align
    while t >= align:
        if dim % t == 0:
            return t
        t -= align
    return dim


def _vmem_capacity_bytes():
    """Per-core physical VMEM; sizes tiles and the scoped-VMEM limit."""
    try:
        info = pltpu.get_tpu_info()
        for attr in ("vmem_capacity_bytes", "vmem_size_bytes", "vmem_bytes"):
            val = getattr(info, attr, None)
            if val:
                return int(val)
    except Exception:
        pass
    return 64 * 1024 * 1024        # conservative default (v7x per-TC VMEM)


# ---------------------------------------------------------------------------
# Kernel 1: time-mix + fused K/V/R projections + sigmoid(R)   (jit_func)
# ---------------------------------------------------------------------------
def proj_kernel(x_ref, xx_ref, mk_ref, mv_ref, mr_ref,
                wk_ref, wv_ref, wr_ref,
                k_ref, v_ref, sr_ref,
                k_acc, v_acc, r_acc):
    kk = pl.program_id(2)

    @pl.when(kk == 0)
    def _():
        k_acc[...] = jnp.zeros_like(k_acc)
        v_acc[...] = jnp.zeros_like(v_acc)
        r_acc[...] = jnp.zeros_like(r_acc)

    x = x_ref[...]                      # (tm, tk)  bf16
    xx = xx_ref[...]                    # (tm, tk)  bf16, time-shifted rows
    # mix*x + (1-mix)*xx  ==  xx + (x - xx)*mix   (shared dx: 3 muls, not 6)
    dx = x - xx
    xk = xx + dx * mk_ref[...]
    xv = xx + dx * mv_ref[...]
    xr = xx + dx * mr_ref[...]

    k_acc[...] += jnp.dot(xk, wk_ref[...], preferred_element_type=jnp.float32)
    v_acc[...] += jnp.dot(xv, wv_ref[...], preferred_element_type=jnp.float32)
    r_acc[...] += jnp.dot(xr, wr_ref[...], preferred_element_type=jnp.float32)

    @pl.when(kk == pl.num_programs(2) - 1)
    def _():
        k_ref[...] = k_acc[...]                               # f32 (feeds exp)
        v_ref[...] = v_acc[...].astype(v_ref.dtype)           # bf16
        sr_ref[...] = jax.nn.sigmoid(r_acc[...]).astype(sr_ref.dtype)  # bf16


# ---------------------------------------------------------------------------
# Kernel 2: WKV linear-attention recurrence (the CUDA wkv_cuda.forward),
#           with sigmoid(r) fused into the output.  8 batches per sublane.
# ---------------------------------------------------------------------------
def wkv_kernel(w_ref, u_ref, k_ref, v_ref, sr_ref, y_ref, p_ref, q_ref, o_ref):
    tc = pl.program_id(2)               # time-chunk index (last, 'arbitrary')

    @pl.when(tc == 0)
    def _():
        p_ref[...] = jnp.zeros_like(p_ref)
        q_ref[...] = jnp.zeros_like(q_ref)
        o_ref[...] = jnp.full_like(o_ref, -1e38)

    blk = p_ref.shape                   # (SUBLANE, ta)
    # Hoisted broadcasts: JAX does not CSE broadcast_in_dim, and with unroll
    # these would otherwise be re-emitted per unrolled iteration.
    w8 = jnp.broadcast_to(w_ref[...], blk)   # already -exp(time_decay)
    u8 = jnp.broadcast_to(u_ref[...], blk)

    tt = k_ref.shape[0]                 # static time-chunk length

    def step(t, carry):
        p, q, o = carry
        kt = k_ref[t]                           # (8, ta) f32
        vt = v_ref[t].astype(jnp.float32)       # bf16 -> f32 (linear term)
        srt = sr_ref[t]                         # bf16 gate

        # --- output at step t: one exp via the max-select identity ---------
        ukt = u8 + kt
        d = o - ukt
        no = jnp.maximum(o, ukt)
        e = jnp.exp(-jnp.abs(d))                # = exp(min - max)
        pos = d >= 0
        ea = jnp.where(pos, 1.0, e)             # exp(o   - no)
        eb = jnp.where(pos, e, 1.0)             # exp(ukt - no)
        num = ea * p + eb * vt
        den = ea * q + eb
        y_ref[t] = (srt * (num * pl.reciprocal(den, approx=True))
                    ).astype(y_ref.dtype)

        # --- state update: one exp ------------------------------------------
        wo_ = w8 + o
        d2 = wo_ - kt
        no2 = jnp.maximum(wo_, kt)
        e_ = jnp.exp(-jnp.abs(d2))
        pos2 = d2 >= 0
        e1 = jnp.where(pos2, 1.0, e_)           # exp(w + o - no2)
        e2 = jnp.where(pos2, e_, 1.0)           # exp(kt    - no2)
        return (e1 * p + e2 * vt, e1 * q + e2, no2)

    unroll = 1
    for cand in (8, 4, 2):
        if tt % cand == 0:
            unroll = cand
            break

    p, q, o = lax.fori_loop(0, tt, step,
                            (p_ref[...], q_ref[...], o_ref[...]),
                            unroll=unroll)
    # persist state across T chunks
    p_ref[...] = p
    q_ref[...] = q
    o_ref[...] = o


# ---------------------------------------------------------------------------
# Kernel 3: output projection  rwkv @ Wo^T   (sr already folded in kernel 2)
# ---------------------------------------------------------------------------
def out_kernel(y_ref, wo_ref, o_ref, acc_ref):
    kk = pl.program_id(2)

    @pl.when(kk == 0)
    def _():
        acc_ref[...] = jnp.zeros_like(acc_ref)

    # y is already bf16 (emitted that way by the WKV kernel) — no cast needed.
    acc_ref[...] += jnp.dot(y_ref[...], wo_ref[...],
                            preferred_element_type=jnp.float32)

    @pl.when(kk == pl.num_programs(2) - 1)
    def _():
        o_ref[...] = acc_ref[...]


# ---------------------------------------------------------------------------
# Wrapper (JAX glue: layout, time-shift, weight transposes, tiling choices)
# ---------------------------------------------------------------------------
@jax.jit
def rwkv_timemix_forward(x, params):
    B, T, C = x.shape
    A = params["wk"].shape[0]           # attn_sz
    f32 = jnp.float32
    bf16 = jnp.bfloat16
    mmdt = MATMUL_DTYPE

    B_pad = ((B + SUBLANE - 1) // SUBLANE) * SUBLANE
    G = B_pad // SUBLANE                # batch groups of 8 (sublane packs)
    M = T * B_pad

    # (B, T, C) -> (T, B_pad, C): batch on sublanes, channels on lanes.
    xt = jnp.transpose(x.astype(f32), (1, 0, 2))
    if B_pad != B:
        xt = jnp.pad(xt, ((0, 0), (0, B_pad - B), (0, 0)))
    # time_shift: xx[t] = x[t-1], xx[0] = 0   (nn.ZeroPad2d((0,0,1,-1)))
    xxt = jnp.pad(xt, ((1, 0), (0, 0), (0, 0)))[:T]

    x2 = xt.reshape(M, C).astype(mmdt)
    xx2 = xxt.reshape(M, C).astype(mmdt)
    # TODO(synk): xx2 is still a second (M, C) HBM materialization; an
    # in-kernel one-row halo (element-offset view of x) would halve kernel 1's
    # activation input DMA, but needs element-granular BlockSpec offsets.

    mk_b = params["time_mix_k"].reshape(1, C).astype(mmdt)
    mv_b = params["time_mix_v"].reshape(1, C).astype(mmdt)
    mr_b = params["time_mix_r"].reshape(1, C).astype(mmdt)

    wk_t = params["wk"].T.astype(mmdt)   # (C, A)
    wv_t = params["wv"].T.astype(mmdt)
    wr_t = params["wr"].T.astype(mmdt)
    wo_t = params["wo"].T.astype(mmdt)   # (A, C)

    # w = -exp(time_decay) hoisted out of the recurrence kernel.
    w_neg = (-jnp.exp(params["time_decay"].astype(f32))).reshape(1, A)
    u2 = params["time_first"].reshape(1, A).astype(f32)

    # --- generation-aware VMEM budget + tile targets -------------------------
    vmem_cap = _vmem_capacity_bytes()
    if vmem_cap >= 96 * 1024 * 1024:     # v5e / v6e: 128 MiB physical VMEM
        vmem_limit = 100 * 1024 * 1024
        tgt_tm, tgt_tn_a, tgt_tn_c = 512, 512, 512
    else:                                # v7x: 64 MiB per TensorCore
        vmem_limit = 48 * 1024 * 1024
        tgt_tm, tgt_tn_a, tgt_tn_c = 512, 256, 256

    tm = _pick_tile(M, tgt_tm, 16)       # matmul rows (16-aligned: bf16 tiles)
    tn_a = _pick_tile(A, tgt_tn_a, 128)  # proj output channels
    tk_c = _pick_tile(C, 512, 128)       # proj contraction
    tn_c = _pick_tile(C, tgt_tn_c, 128)  # out-proj output channels
    tk_a = _pick_tile(A, 512, 128)       # out-proj contraction

    tt = _pick_tile(T, 128, 1)           # WKV time chunk
    ta_target = 256                      # < matmul tiles: keeps the serial
    if G == 1 and A >= 256:              # recurrence off the 64-vreg cliff
        ta_target = min(ta_target, A // 2)   # >=2 parallel A blocks so both
    ta = _pick_tile(A, ta_target, 128)       # v7x TensorCores get work

    mm_params = pltpu.CompilerParams(
        dimension_semantics=("parallel", "parallel", "arbitrary"),
        vmem_limit_bytes=vmem_limit)

    # --- kernel 1: fused K/V/R projections + sigmoid(R) ---------------------
    row_spec = pl.BlockSpec((tm, tk_c), lambda i, j, k: (i, k))
    mix_spec = pl.BlockSpec((1, tk_c), lambda i, j, k: (0, k))
    wt_spec = pl.BlockSpec((tk_c, tn_a), lambda i, j, k: (k, j))
    po_spec = pl.BlockSpec((tm, tn_a), lambda i, j, k: (i, j))

    k2, v2, sr2 = pl.pallas_call(
        proj_kernel,
        out_shape=(jax.ShapeDtypeStruct((M, A), f32),    # k stays f32 (exp!)
                   jax.ShapeDtypeStruct((M, A), bf16),   # v: linear term
                   jax.ShapeDtypeStruct((M, A), bf16)),  # sr: gate in (0,1)
        grid=(M // tm, A // tn_a, C // tk_c),
        in_specs=[row_spec, row_spec, mix_spec, mix_spec, mix_spec,
                  wt_spec, wt_spec, wt_spec],
        out_specs=(po_spec, po_spec, po_spec),
        scratch_shapes=[pltpu.VMEM((tm, tn_a), f32),
                        pltpu.VMEM((tm, tn_a), f32),
                        pltpu.VMEM((tm, tn_a), f32)],
        compiler_params=mm_params,
    )(x2, xx2, mk_b, mv_b, mr_b, wk_t, wv_t, wr_t)

    # (M, A) is bit-identical to (T, G, 8, A): free reshape, no relayout.
    # The explicit 8-sized axis makes every WKV block's second-minor dim a
    # full array dim, keeping the bf16 blocks legal for any padded batch.
    k4 = k2.reshape(T, G, SUBLANE, A)
    v4 = v2.reshape(T, G, SUBLANE, A)
    sr4 = sr2.reshape(T, G, SUBLANE, A)

    # --- kernel 2: WKV recurrence, 8 batches per sublane, T-chunked ----------
    tb_spec = pl.BlockSpec((tt, None, SUBLANE, ta),
                           lambda g, a, t: (t, g, 0, a))
    wu_spec = pl.BlockSpec((1, ta), lambda g, a, t: (0, a))
    # NOTE: if the bundle dump shows exposed DMA in this kernel, add
    # pipeline_mode=pl.Buffered(3) to tb_spec (only costs VMEM at ta<=256).

    y4 = pl.pallas_call(
        wkv_kernel,
        out_shape=jax.ShapeDtypeStruct((T, G, SUBLANE, A), bf16),
        grid=(G, A // ta, T // tt),
        in_specs=[wu_spec, wu_spec, tb_spec, tb_spec, tb_spec],
        out_specs=tb_spec,
        scratch_shapes=[pltpu.VMEM((SUBLANE, ta), f32),
                        pltpu.VMEM((SUBLANE, ta), f32),
                        pltpu.VMEM((SUBLANE, ta), f32)],
        compiler_params=mm_params,
    )(w_neg, u2, k4, v4, sr4)

    # --- kernel 3: output projection (sigmoid(r)*wkv already fused in y) ----
    y2 = y4.reshape(M, A)
    out2 = pl.pallas_call(
        out_kernel,
        out_shape=jax.ShapeDtypeStruct((M, C), f32),
        grid=(M // tm, C // tn_c, A // tk_a),
        in_specs=[pl.BlockSpec((tm, tk_a), lambda i, j, k: (i, k)),
                  pl.BlockSpec((tk_a, tn_c), lambda i, j, k: (k, j))],
        out_specs=pl.BlockSpec((tm, tn_c), lambda i, j, k: (i, j)),
        scratch_shapes=[pltpu.VMEM((tm, tn_c), f32)],
        compiler_params=mm_params,
    )(y2, wo_t)

    # TODO(synk): this final relayout is pure plumbing; a downstream layer
    # consuming time-major (T, B, C) could skip it and save an HBM round trip.
    out = jnp.transpose(out2.reshape(T, B_pad, C), (1, 0, 2))[:B]
    return out


# ---------------------------------------------------------------------------
# Deterministic parameter init (mirrors RWKV_TimeMix.__init__)
# ---------------------------------------------------------------------------
def init_params(n_embd, attn_sz, n_layer, layer_id, key):
    ratio_0_to_1 = layer_id / (n_layer - 1)
    ratio_1_to_almost0 = 1.0 - layer_id / n_layer

    h = jnp.arange(attn_sz, dtype=jnp.float32)
    decay_speed = -5.0 + 8.0 * (h / (attn_sz - 1)) ** (0.7 + 1.3 * ratio_0_to_1)

    zigzag = jnp.array([((i + 1) % 3 - 1) * 0.5 for i in range(attn_sz)],
                       dtype=jnp.float32)
    time_first = jnp.ones(attn_sz, jnp.float32) * math.log(0.3) + zigzag

    xinit = jnp.arange(n_embd, dtype=jnp.float32) / n_embd
    time_mix_k = xinit ** ratio_1_to_almost0
    time_mix_v = xinit ** ratio_1_to_almost0 + 0.3 * ratio_0_to_1
    time_mix_r = xinit ** (0.5 * ratio_1_to_almost0)

    k1, k2, k3, k4 = jax.random.split(key, 4)
    b_in = 1.0 / math.sqrt(n_embd)
    b_att = 1.0 / math.sqrt(attn_sz)
    wk = jax.random.uniform(k1, (attn_sz, n_embd), jnp.float32, -b_in, b_in)
    wv = jax.random.uniform(k2, (attn_sz, n_embd), jnp.float32, -b_in, b_in)
    wr = jax.random.uniform(k3, (attn_sz, n_embd), jnp.float32, -b_in, b_in)
    wo = jax.random.uniform(k4, (n_embd, attn_sz), jnp.float32, -b_att, b_att)

    return dict(time_decay=decay_speed, time_first=time_first,
                time_mix_k=time_mix_k, time_mix_v=time_mix_v,
                time_mix_r=time_mix_r, wk=wk, wv=wv, wr=wr, wo=wo)


# ---------------------------------------------------------------------------
# Pure-JAX reference (f32, HIGHEST precision) for a sanity check
# ---------------------------------------------------------------------------
def ref_forward(x, P):
    B, T, C = x.shape
    A = P["wk"].shape[0]
    xx = jnp.pad(x, ((0, 0), (1, 0), (0, 0)))[:, :T, :]
    mk, mv, mr = P["time_mix_k"], P["time_mix_v"], P["time_mix_r"]
    xk = x * mk + xx * (1 - mk)
    xv = x * mv + xx * (1 - mv)
    xr = x * mr + xx * (1 - mr)
    hi = jax.lax.Precision.HIGHEST
    k = jnp.einsum("btc,ac->bta", xk, P["wk"], precision=hi)
    v = jnp.einsum("btc,ac->bta", xv, P["wv"], precision=hi)
    r = jnp.einsum("btc,ac->bta", xr, P["wr"], precision=hi)
    sr = jax.nn.sigmoid(r)

    w = -jnp.exp(P["time_decay"])
    u = P["time_first"]

    def step(carry, kv_t):
        p, q, o = carry
        kt, vt = kv_t
        no = jnp.maximum(o, u + kt)
        Aa = jnp.exp(o - no)
        Bb = jnp.exp(u + kt - no)
        y = (Aa * p + Bb * vt) / (Aa * q + Bb)
        no2 = jnp.maximum(w + o, kt)
        A2 = jnp.exp(w + o - no2)
        B2 = jnp.exp(kt - no2)
        return (A2 * p + B2 * vt, A2 * q + B2, no2), y

    p0 = jnp.zeros((B, A), jnp.float32)
    q0 = jnp.zeros((B, A), jnp.float32)
    o0 = jnp.full((B, A), -1e38, jnp.float32)
    _, ys = jax.lax.scan(step, (p0, q0, o0),
                         (k.transpose(1, 0, 2), v.transpose(1, 0, 2)))
    wkv = ys.transpose(1, 0, 2)
    return jnp.einsum("bta,ca->btc", sr * wkv, P["wo"], precision=hi)


if __name__ == "__main__":
    # Small config consistent with the module: batch=2, seq=8, n_embd=32.
    B, T, n_embd = 2, 8, 32
    dim_att = 0
    attn_sz = n_embd if dim_att == 0 else dim_att
    n_layer, layer_id = 4, 1

    key = jax.random.PRNGKey(0)
    kx, kp = jax.random.split(key)
    x = jax.random.normal(kx, (B, T, n_embd), jnp.float32)
    params = init_params(n_embd, attn_sz, n_layer, layer_id, kp)

    out = rwkv_timemix_forward(x, params)
    out = jax.block_until_ready(out)

    ref = ref_forward(x, params)
    assert out.shape == (B, T, n_embd)
    assert bool(jnp.all(jnp.isfinite(out)))
    # bf16 MXU inputs (f32 accumulate), bf16 v/sr/y streams, and the EUP
    # approximate reciprocal in the per-step divide -> bf16-level tolerance;
    # the WKV recurrence state itself is exact f32.
    assert jnp.allclose(out, ref, atol=2e-2, rtol=2e-2)

    print("KERNEL_OK")
</pallas_src>

<mosaic_0001>
module attributes {stable_mosaic.version = 11 : i64} {
  func.func @wkv_kernel(%arg0: i32, %arg1: i32, %arg2: i32, %arg3: memref<1x32xf32, #tpu.memory_space<vmem>>, %arg4: memref<1x32xf32, #tpu.memory_space<vmem>>, %arg5: memref<8x1x8x32xf32, #tpu.memory_space<vmem>>, %arg6: memref<8x1x8x32xbf16, #tpu.memory_space<vmem>>, %arg7: memref<8x1x8x32xbf16, #tpu.memory_space<vmem>>, %arg8: memref<8x1x8x32xbf16, #tpu.memory_space<vmem>>, %arg9: memref<8x32xf32, #tpu.memory_space<vmem>>, %arg10: memref<8x32xf32, #tpu.memory_space<vmem>>, %arg11: memref<8x32xf32, #tpu.memory_space<vmem>>) attributes {dimension_semantics = [#tpu.dimension_semantics<parallel>, #tpu.dimension_semantics<parallel>, #tpu.dimension_semantics<arbitrary>], iteration_bounds = array<i64: 1, 1, 1>, scalar_prefetch = 0 : i64, scratch_operands = 3 : i64, tpu.core_type = #tpu.core_type<tc>, window_params = [{transform_indices = @transform_0, window_bounds = array<i64: 1, 32>}, {transform_indices = @transform_1, window_bounds = array<i64: 1, 32>}, {transform_indices = @transform_2, window_bounds = array<i64: 8, 1, 8, 32>}, {transform_indices = @transform_3, window_bounds = array<i64: 8, 1, 8, 32>}, {transform_indices = @transform_4, window_bounds = array<i64: 8, 1, 8, 32>}, {transform_indices = @transform_5, window_bounds = array<i64: 8, 1, 8, 32>}]} {
    %c0_i32 = arith.constant 0 : i32
    %0 = arith.cmpi eq, %arg2, %c0_i32 : i32
    %1 = arith.extui %0 : i1 to i32
    %c0_i32_0 = arith.constant 0 : i32
    %2 = arith.cmpi ne, %1, %c0_i32_0 : i32
    scf.if %2 {
      %cst_176 = arith.constant 0.000000e+00 : f32
      %447 = vector.broadcast %cst_176 : f32 to vector<8x32xf32>
      %c0_177 = arith.constant 0 : index
      %c0_178 = arith.constant 0 : index
      %448 = vector.load %arg9[%c0_177, %c0_178] : memref<8x32xf32, #tpu.memory_space<vmem>>, vector<8x32xf32>
      tpu.vector_store %arg9[%c0_177, %c0_178], %447 {strides = array<i32>} : memref<8x32xf32, #tpu.memory_space<vmem>>, vector<8x32xf32>,
      %cst_179 = arith.constant 0.000000e+00 : f32
      %449 = vector.broadcast %cst_179 : f32 to vector<8x32xf32>
      %c0_180 = arith.constant 0 : index
      %c0_181 = arith.constant 0 : index
      %450 = vector.load %arg10[%c0_180, %c0_181] : memref<8x32xf32, #tpu.memory_space<vmem>>, vector<8x32xf32>
      tpu.vector_store %arg10[%c0_180, %c0_181], %449 {strides = array<i32>} : memref<8x32xf32, #tpu.memory_space<vmem>>, vector<8x32xf32>,
      %cst_182 = arith.constant -9.99999968E+37 : f32
      %451 = vector.broadcast %cst_182 : f32 to vector<8x32xf32>
      %c0_183 = arith.constant 0 : index
      %c0_184 = arith.constant 0 : index
      %452 = vector.load %arg11[%c0_183, %c0_184] : memref<8x32xf32, #tpu.memory_space<vmem>>, vector<8x32xf32>
      tpu.vector_store %arg11[%c0_183, %c0_184], %451 {strides = array<i32>} : memref<8x32xf32, #tpu.memory_space<vmem>>, vector<8x32xf32>,
    } else {
    }
    %c0 = arith.constant 0 : index
    %c0_1 = arith.constant 0 : index
    %3 = vector.load %arg3[%c0, %c0_1] : memref<1x32xf32, #tpu.memory_space<vmem>>, vector<1x32xf32>
    %4 = vector.shape_cast %3 : vector<1x32xf32> to vector<1x32xf32>
    %5 = vector.broadcast %4 : vector<1x32xf32> to vector<8x32xf32>
    %c0_2 = arith.constant 0 : index
    %c0_3 = arith.constant 0 : index
    %6 = vector.load %arg4[%c0_2, %c0_3] : memref<1x32xf32, #tpu.memory_space<vmem>>, vector<1x32xf32>
    %7 = vector.shape_cast %6 : vector<1x32xf32> to vector<1x32xf32>
    %8 = vector.broadcast %7 : vector<1x32xf32> to vector<8x32xf32>
    %c0_4 = arith.constant 0 : index
    %c0_5 = arith.constant 0 : index
    %9 = vector.load %arg9[%c0_4, %c0_5] : memref<8x32xf32, #tpu.memory_space<vmem>>, vector<8x32xf32>
    %c0_6 = arith.constant 0 : index
    %c0_7 = arith.constant 0 : index
    %10 = vector.load %arg10[%c0_6, %c0_7] : memref<8x32xf32, #tpu.memory_space<vmem>>, vector<8x32xf32>
    %c0_8 = arith.constant 0 : index
    %c0_9 = arith.constant 0 : index
    %11 = vector.load %arg11[%c0_8, %c0_9] : memref<8x32xf32, #tpu.memory_space<vmem>>, vector<8x32xf32>
    %c0_i32_10 = arith.constant 0 : i32
    %12 = arith.index_cast %c0_i32_10 : i32 to index
    %c0_11 = arith.constant 0 : index
    %c0_12 = arith.constant 0 : index
    %c0_13 = arith.constant 0 : index
    %13 = vector.load %arg5[%12, %c0_11, %c0_12, %c0_13] : memref<8x1x8x32xf32, #tpu.memory_space<vmem>>, vector<1x1x8x32xf32>
    %14 = vector.shape_cast %13 : vector<1x1x8x32xf32> to vector<8x32xf32>
    %15 = arith.index_cast %c0_i32_10 : i32 to index
    %c0_14 = arith.constant 0 : index
    %c0_15 = arith.constant 0 : index
    %c0_16 = arith.constant 0 : index
    %16 = vector.load %arg6[%15, %c0_14, %c0_15, %c0_16] : memref<8x1x8x32xbf16, #tpu.memory_space<vmem>>, vector<1x1x8x32xbf16>
    %17 = vector.shape_cast %16 : vector<1x1x8x32xbf16> to vector<8x32xbf16>
    %18 = arith.extf %17 : vector<8x32xbf16> to vector<8x32xf32>
    %19 = arith.index_cast %c0_i32_10 : i32 to index
    %c0_17 = arith.constant 0 : index
    %c0_18 = arith.constant 0 : index
    %c0_19 = arith.constant 0 : index
    %20 = vector.load %arg7[%19, %c0_17, %c0_18, %c0_19] : memref<8x1x8x32xbf16, #tpu.memory_space<vmem>>, vector<1x1x8x32xbf16>
    %21 = vector.shape_cast %20 : vector<1x1x8x32xbf16> to vector<8x32xbf16>
    %22 = arith.addf %8, %14 : vector<8x32xf32>
    %23 = arith.subf %11, %22 : vector<8x32xf32>
    %24 = math.absf %23 : vector<8x32xf32>
    %cst = arith.constant 0.000000e+00 : f32
    %25 = vector.broadcast %cst : f32 to vector<8x32xf32>
    %26 = arith.subf %25, %24 : vector<8x32xf32>
    %27 = math.exp %26 : vector<8x32xf32>
    %cst_20 = arith.constant 0.000000e+00 : f32
    %28 = vector.broadcast %cst_20 : f32 to vector<8x32xf32>
    %29 = arith.cmpf oge, %23, %28 : vector<8x32xf32>
    %cst_21 = arith.constant 1.000000e+00 : f32
    %30 = vector.broadcast %cst_21 : f32 to vector<8x32xf32>
    %31 = arith.select %29, %30, %27 : vector<8x32xi1>, vector<8x32xf32>
    %cst_22 = arith.constant 1.000000e+00 : f32
    %32 = vector.broadcast %cst_22 : f32 to vector<8x32xf32>
    %33 = arith.select %29, %27, %32 : vector<8x32xi1>, vector<8x32xf32>
    %34 = arith.mulf %31, %9 : vector<8x32xf32>
    %35 = arith.mulf %33, %18 : vector<8x32xf32>
    %36 = arith.addf %34, %35 : vector<8x32xf32>
    %37 = arith.mulf %31, %10 : vector<8x32xf32>
    %38 = arith.addf %37, %33 : vector<8x32xf32>
    %39 = tpu.reciprocal %38 {approx = true} : vector<8x32xf32> -> vector<8x32xf32>
    %40 = arith.mulf %36, %39 : vector<8x32xf32>
    %41 = arith.extf %21 : vector<8x32xbf16> to vector<8x32xf32>
    %42 = arith.mulf %41, %40 : vector<8x32xf32>
    %43 = arith.truncf %42 : vector<8x32xf32> to vector<8x32xbf16>
    %44 = arith.index_cast %c0_i32_10 : i32 to index
    %c0_23 = arith.constant 0 : index
    %c0_24 = arith.constant 0 : index
    %c0_25 = arith.constant 0 : index
    %45 = vector.load %arg8[%44, %c0_23, %c0_24, %c0_25] : memref<8x1x8x32xbf16, #tpu.memory_space<vmem>>, vector<1x1x8x32xbf16>
    %46 = vector.shape_cast %45 : vector<1x1x8x32xbf16> to vector<8x32xbf16>
    %47 = vector.shape_cast %43 : vector<8x32xbf16> to vector<1x1x8x32xbf16>
    tpu.vector_store %arg8[%44, %c0_23, %c0_24, %c0_25], %47 {strides = array<i32>} : memref<8x1x8x32xbf16, #tpu.memory_space<vmem>>, vector<1x1x8x32xbf16>,
    %48 = arith.addf %5, %11 : vector<8x32xf32>
    %49 = arith.subf %48, %14 : vector<8x32xf32>
    %50 = arith.maximumf %48, %14 : vector<8x32xf32>
    %51 = math.absf %49 : vector<8x32xf32>
    %cst_26 = arith.constant 0.000000e+00 : f32
    %52 = vector.broadcast %cst_26 : f32 to vector<8x32xf32>
    %53 = arith.subf %52, %51 : vector<8x32xf32>
    %54 = math.exp %53 : vector<8x32xf32>
    %cst_27 = arith.constant 0.000000e+00 : f32
    %55 = vector.broadcast %cst_27 : f32 to vector<8x32xf32>
    %56 = arith.cmpf oge, %49, %55 : vector<8x32xf32>
    %cst_28 = arith.constant 1.000000e+00 : f32
    %57 = vector.broadcast %cst_28 : f32 to vector<8x32xf32>
    %58 = arith.select %56, %57, %54 : vector<8x32xi1>, vector<8x32xf32>
    %cst_29 = arith.constant 1.000000e+00 : f32
    %59 = vector.broadcast %cst_29 : f32 to vector<8x32xf32>
    %60 = arith.select %56, %54, %59 : vector<8x32xi1>, vector<8x32xf32>
    %61 = arith.mulf %58, %9 : vector<8x32xf32>
    %62 = arith.mulf %60, %18 : vector<8x32xf32>
    %63 = arith.addf %61, %62 : vector<8x32xf32>
    %64 = arith.mulf %58, %10 : vector<8x32xf32>
    %65 = arith.addf %64, %60 : vector<8x32xf32>
    %c1_i32 = arith.constant 1 : i32
    %66 = arith.index_cast %c1_i32 : i32 to index
    %c0_30 = arith.constant 0 : index
    %c0_31 = arith.constant 0 : index
    %c0_32 = arith.constant 0 : index
    %67 = vector.load %arg5[%66, %c0_30, %c0_31, %c0_32] : memref<8x1x8x32xf32, #tpu.memory_space<vmem>>, vector<1x1x8x32xf32>
    %68 = vector.shape_cast %67 : vector<1x1x8x32xf32> to vector<8x32xf32>
    %69 = arith.index_cast %c1_i32 : i32 to index
    %c0_33 = arith.constant 0 : index
    %c0_34 = arith.constant 0 : index
    %c0_35 = arith.constant 0 : index
    %70 = vector.load %arg6[%69, %c0_33, %c0_34, %c0_35] : memref<8x1x8x32xbf16, #tpu.memory_space<vmem>>, vector<1x1x8x32xbf16>
    %71 = vector.shape_cast %70 : vector<1x1x8x32xbf16> to vector<8x32xbf16>
    %72 = arith.extf %71 : vector<8x32xbf16> to vector<8x32xf32>
    %73 = arith.index_cast %c1_i32 : i32 to index
    %c0_36 = arith.constant 0 : index
    %c0_37 = arith.constant 0 : index
    %c0_38 = arith.constant 0 : index
    %74 = vector.load %arg7[%73, %c0_36, %c0_37, %c0_38] : memref<8x1x8x32xbf16, #tpu.memory_space<vmem>>, vector<1x1x8x32xbf16>
    %75 = vector.shape_cast %74 : vector<1x1x8x32xbf16> to vector<8x32xbf16>
    %76 = arith.addf %8, %68 : vector<8x32xf32>
    %77 = arith.subf %50, %76 : vector<8x32xf32>
    %78 = math.absf %77 : vector<8x32xf32>
    %cst_39 = arith.constant 0.000000e+00 : f32
    %79 = vector.broadcast %cst_39 : f32 to vector<8x32xf32>
    %80 = arith.subf %79, %78 : vector<8x32xf32>
    %81 = math.exp %80 : vector<8x32xf32>
    %cst_40 = arith.constant 0.000000e+00 : f32
    %82 = vector.broadcast %cst_40 : f32 to vector<8x32xf32>
    %83 = arith.cmpf oge, %77, %82 : vector<8x32xf32>
    %cst_41 = arith.constant 1.000000e+00 : f32
    %84 = vector.broadcast %cst_41 : f32 to vector<8x32xf32>
    %85 = arith.select %83, %84, %81 : vector<8x32xi1>, vector<8x32xf32>
    %cst_42 = arith.constant 1.000000e+00 : f32
    %86 = vector.broadcast %cst_42 : f32 to vector<8x32xf32>
    %87 = arith.select %83, %81, %86 : vector<8x32xi1>, vector<8x32xf32>
    %88 = arith.mulf %85, %63 : vector<8x32xf32>
    %89 = arith.mulf %87, %72 : vector<8x32xf32>
    %90 = arith.addf %88, %89 : vector<8x32xf32>
    %91 = arith.mulf %85, %65 : vector<8x32xf32>
    %92 = arith.addf %91, %87 : vector<8x32xf32>
    %93 = tpu.reciprocal %92 {approx = true} : vector<8x32xf32> -> vector<8x32xf32>
    %94 = arith.mulf %90, %93 : vector<8x32xf32>
    %95 = arith.extf %75 : vector<8x32xbf16> to vector<8x32xf32>
    %96 = arith.mulf %95, %94 : vector<8x32xf32>
    %97 = arith.truncf %96 : vector<8x32xf32> to vector<8x32xbf16>
    %98 = arith.index_cast %c1_i32 : i32 to index
    %c0_43 = arith.constant 0 : index
    %c0_44 = arith.constant 0 : index
    %c0_45 = arith.constant 0 : index
    %99 = vector.load %arg8[%98, %c0_43, %c0_44, %c0_45] : memref<8x1x8x32xbf16, #tpu.memory_space<vmem>>, vector<1x1x8x32xbf16>
    %100 = vector.shape_cast %99 : vector<1x1x8x32xbf16> to vector<8x32xbf16>
    %101 = vector.shape_cast %97 : vector<8x32xbf16> to vector<1x1x8x32xbf16>
    tpu.vector_store %arg8[%98, %c0_43, %c0_44, %c0_45], %101 {strides = array<i32>} : memref<8x1x8x32xbf16, #tpu.memory_space<vmem>>, vector<1x1x8x32xbf16>,
    %102 = arith.addf %5, %50 : vector<8x32xf32>
    %103 = arith.subf %102, %68 : vector<8x32xf32>
    %104 = arith.maximumf %102, %68 : vector<8x32xf32>
    %105 = math.absf %103 : vector<8x32xf32>
    %cst_46 = arith.constant 0.000000e+00 : f32
    %106 = vector.broadcast %cst_46 : f32 to vector<8x32xf32>
    %107 = arith.subf %106, %105 : vector<8x32xf32>
    %108 = math.exp %107 : vector<8x32xf32>
    %cst_47 = arith.constant 0.000000e+00 : f32
    %109 = vector.broadcast %cst_47 : f32 to vector<8x32xf32>
    %110 = arith.cmpf oge, %103, %109 : vector<8x32xf32>
    %cst_48 = arith.constant 1.000000e+00 : f32
    %111 = vector.broadcast %cst_48 : f32 to vector<8x32xf32>
    %112 = arith.select %110, %111, %108 : vector<8x32xi1>, vector<8x32xf32>
    %cst_49 = arith.constant 1.000000e+00 : f32
    %113 = vector.broadcast %cst_49 : f32 to vector<8x32xf32>
    %114 = arith.select %110, %108, %113 : vector<8x32xi1>, vector<8x32xf32>
    %115 = arith.mulf %112, %63 : vector<8x32xf32>
    %116 = arith.mulf %114, %72 : vector<8x32xf32>
    %117 = arith.addf %115, %116 : vector<8x32xf32>
    %118 = arith.mulf %112, %65 : vector<8x32xf32>
    %119 = arith.addf %118, %114 : vector<8x32xf32>
    %c2_i32 = arith.constant 2 : i32
    %120 = arith.index_cast %c2_i32 : i32 to index
    %c0_50 = arith.constant 0 : index
    %c0_51 = arith.constant 0 : index
    %c0_52 = arith.constant 0 : index
    %121 = vector.load %arg5[%120, %c0_50, %c0_51, %c0_52] : memref<8x1x8x32xf32, #tpu.memory_space<vmem>>, vector<1x1x8x32xf32>
    %122 = vector.shape_cast %121 : vector<1x1x8x32xf32> to vector<8x32xf32>
    %123 = arith.index_cast %c2_i32 : i32 to index
    %c0_53 = arith.constant 0 : index
    %c0_54 = arith.constant 0 : index
    %c0_55 = arith.constant 0 : index
    %124 = vector.load %arg6[%123, %c0_53, %c0_54, %c0_55] : memref<8x1x8x32xbf16, #tpu.memory_space<vmem>>, vector<1x1x8x32xbf16>
    %125 = vector.shape_cast %124 : vector<1x1x8x32xbf16> to vector<8x32xbf16>
    %126 = arith.extf %125 : vector<8x32xbf16> to vector<8x32xf32>
    %127 = arith.index_cast %c2_i32 : i32 to index
    %c0_56 = arith.constant 0 : index
    %c0_57 = arith.constant 0 : index
    %c0_58 = arith.constant 0 : index
    %128 = vector.load %arg7[%127, %c0_56, %c0_57, %c0_58] : memref<8x1x8x32xbf16, #tpu.memory_space<vmem>>, vector<1x1x8x32xbf16>
    %129 = vector.shape_cast %128 : vector<1x1x8x32xbf16> to vector<8x32xbf16>
    %130 = arith.addf %8, %122 : vector<8x32xf32>
    %131 = arith.subf %104, %130 : vector<8x32xf32>
    %132 = math.absf %131 : vector<8x32xf32>
    %cst_59 = arith.constant 0.000000e+00 : f32
    %133 = vector.broadcast %cst_59 : f32 to vector<8x32xf32>
    %134 = arith.subf %133, %132 : vector<8x32xf32>
    %135 = math.exp %134 : vector<8x32xf32>
    %cst_60 = arith.constant 0.000000e+00 : f32
    %136 = vector.broadcast %cst_60 : f32 to vector<8x32xf32>
    %137 = arith.cmpf oge, %131, %136 : vector<8x32xf32>
    %cst_61 = arith.constant 1.000000e+00 : f32
    %138 = vector.broadcast %cst_61 : f32 to vector<8x32xf32>
    %139 = arith.select %137, %138, %135 : vector<8x32xi1>, vector<8x32xf32>
    %cst_62 = arith.constant 1.000000e+00 : f32
    %140 = vector.broadcast %cst_62 : f32 to vector<8x32xf32>
    %141 = arith.select %137, %135, %140 : vector<8x32xi1>, vector<8x32xf32>
    %142 = arith.mulf %139, %117 : vector<8x32xf32>
    %143 = arith.mulf %141, %126 : vector<8x32xf32>
    %144 = arith.addf %142, %143 : vector<8x32xf32>
    %145 = arith.mulf %139, %119 : vector<8x32xf32>
    %146 = arith.addf %145, %141 : vector<8x32xf32>
    %147 = tpu.reciprocal %146 {approx = true} : vector<8x32xf32> -> vector<8x32xf32>
    %148 = arith.mulf %144, %147 : vector<8x32xf32>
    %149 = arith.extf %129 : vector<8x32xbf16> to vector<8x32xf32>
    %150 = arith.mulf %149, %148 : vector<8x32xf32>
    %151 = arith.truncf %150 : vector<8x32xf32> to vector<8x32xbf16>
    %152 = arith.index_cast %c2_i32 : i32 to index
    %c0_63 = arith.constant 0 : index
    %c0_64 = arith.constant 0 : index
    %c0_65 = arith.constant 0 : index
    %153 = vector.load %arg8[%152, %c0_63, %c0_64, %c0_65] : memref<8x1x8x32xbf16, #tpu.memory_space<vmem>>, vector<1x1x8x32xbf16>
    %154 = vector.shape_cast %153 : vector<1x1x8x32xbf16> to vector<8x32xbf16>
    %155 = vector.shape_cast %151 : vector<8x32xbf16> to vector<1x1x8x32xbf16>
    tpu.vector_store %arg8[%152, %c0_63, %c0_64, %c0_65], %155 {strides = array<i32>} : memref<8x1x8x32xbf16, #tpu.memory_space<vmem>>, vector<1x1x8x32xbf16>,
    %156 = arith.addf %5, %104 : vector<8x32xf32>
    %157 = arith.subf %156, %122 : vector<8x32xf32>
    %158 = arith.maximumf %156, %122 : vector<8x32xf32>
    %159 = math.absf %157 : vector<8x32xf32>
    %cst_66 = arith.constant 0.000000e+00 : f32
    %160 = vector.broadcast %cst_66 : f32 to vector<8x32xf32>
    %161 = arith.subf %160, %159 : vector<8x32xf32>
    %162 = math.exp %161 : vector<8x32xf32>
    %cst_67 = arith.constant 0.000000e+00 : f32
    %163 = vector.broadcast %cst_67 : f32 to vector<8x32xf32>
    %164 = arith.cmpf oge, %157, %163 : vector<8x32xf32>
    %cst_68 = arith.constant 1.000000e+00 : f32
    %165 = vector.broadcast %cst_68 : f32 to vector<8x32xf32>
    %166 = arith.select %164, %165, %162 : vector<8x32xi1>, vector<8x32xf32>
    %cst_69 = arith.constant 1.000000e+00 : f32
    %167 = vector.broadcast %cst_69 : f32 to vector<8x32xf32>
    %168 = arith.select %164, %162, %167 : vector<8x32xi1>, vector<8x32xf32>
    %169 = arith.mulf %166, %117 : vector<8x32xf32>
    %170 = arith.mulf %168, %126 : vector<8x32xf32>
    %171 = arith.addf %169, %170 : vector<8x32xf32>
    %172 = arith.mulf %166, %119 : vector<8x32xf32>
    %173 = arith.addf %172, %168 : vector<8x32xf32>
    %c3_i32 = arith.constant 3 : i32
    %174 = arith.index_cast %c3_i32 : i32 to index
    %c0_70 = arith.constant 0 : index
    %c0_71 = arith.constant 0 : index
    %c0_72 = arith.constant 0 : index
    %175 = vector.load %arg5[%174, %c0_70, %c0_71, %c0_72] : memref<8x1x8x32xf32, #tpu.memory_space<vmem>>, vector<1x1x8x32xf32>
    %176 = vector.shape_cast %175 : vector<1x1x8x32xf32> to vector<8x32xf32>
    %177 = arith.index_cast %c3_i32 : i32 to index
    %c0_73 = arith.constant 0 : index
    %c0_74 = arith.constant 0 : index
    %c0_75 = arith.constant 0 : index
    %178 = vector.load %arg6[%177, %c0_73, %c0_74, %c0_75] : memref<8x1x8x32xbf16, #tpu.memory_space<vmem>>, vector<1x1x8x32xbf16>
    %179 = vector.shape_cast %178 : vector<1x1x8x32xbf16> to vector<8x32xbf16>
    %180 = arith.extf %179 : vector<8x32xbf16> to vector<8x32xf32>
    %181 = arith.index_cast %c3_i32 : i32 to index
    %c0_76 = arith.constant 0 : index
    %c0_77 = arith.constant 0 : index
    %c0_78 = arith.constant 0 : index
    %182 = vector.load %arg7[%181, %c0_76, %c0_77, %c0_78] : memref<8x1x8x32xbf16, #tpu.memory_space<vmem>>, vector<1x1x8x32xbf16>
    %183 = vector.shape_cast %182 : vector<1x1x8x32xbf16> to vector<8x32xbf16>
    %184 = arith.addf %8, %176 : vector<8x32xf32>
    %185 = arith.subf %158, %184 : vector<8x32xf32>
    %186 = math.absf %185 : vector<8x32xf32>
    %cst_79 = arith.constant 0.000000e+00 : f32
    %187 = vector.broadcast %cst_79 : f32 to vector<8x32xf32>
    %188 = arith.subf %187, %186 : vector<8x32xf32>
    %189 = math.exp %188 : vector<8x32xf32>
    %cst_80 = arith.constant 0.000000e+00 : f32
    %190 = vector.broadcast %cst_80 : f32 to vector<8x32xf32>
    %191 = arith.cmpf oge, %185, %190 : vector<8x32xf32>
    %cst_81 = arith.constant 1.000000e+00 : f32
    %192 = vector.broadcast %cst_81 : f32 to vector<8x32xf32>
    %193 = arith.select %191, %192, %189 : vector<8x32xi1>, vector<8x32xf32>
    %cst_82 = arith.constant 1.000000e+00 : f32
    %194 = vector.broadcast %cst_82 : f32 to vector<8x32xf32>
    %195 = arith.select %191, %189, %194 : vector<8x32xi1>, vector<8x32xf32>
    %196 = arith.mulf %193, %171 : vector<8x32xf32>
    %197 = arith.mulf %195, %180 : vector<8x32xf32>
    %198 = arith.addf %196, %197 : vector<8x32xf32>
    %199 = arith.mulf %193, %173 : vector<8x32xf32>
    %200 = arith.addf %199, %195 : vector<8x32xf32>
    %201 = tpu.reciprocal %200 {approx = true} : vector<8x32xf32> -> vector<8x32xf32>
    %202 = arith.mulf %198, %201 : vector<8x32xf32>
    %203 = arith.extf %183 : vector<8x32xbf16> to vector<8x32xf32>
    %204 = arith.mulf %203, %202 : vector<8x32xf32>
    %205 = arith.truncf %204 : vector<8x32xf32> to vector<8x32xbf16>
    %206 = arith.index_cast %c3_i32 : i32 to index
    %c0_83 = arith.constant 0 : index
    %c0_84 = arith.constant 0 : index
    %c0_85 = arith.constant 0 : index
    %207 = vector.load %arg8[%206, %c0_83, %c0_84, %c0_85] : memref<8x1x8x32xbf16, #tpu.memory_space<vmem>>, vector<1x1x8x32xbf16>
    %208 = vector.shape_cast %207 : vector<1x1x8x32xbf16> to vector<8x32xbf16>
    %209 = vector.shape_cast %205 : vector<8x32xbf16> to vector<1x1x8x32xbf16>
    tpu.vector_store %arg8[%206, %c0_83, %c0_84, %c0_85], %209 {strides = array<i32>} : memref<8x1x8x32xbf16, #tpu.memory_space<vmem>>, vector<1x1x8x32xbf16>,
    %210 = arith.addf %5, %158 : vector<8x32xf32>
    %211 = arith.subf %210, %176 : vector<8x32xf32>
    %212 = arith.maximumf %210, %176 : vector<8x32xf32>
    %213 = math.absf %211 : vector<8x32xf32>
    %cst_86 = arith.constant 0.000000e+00 : f32
    %214 = vector.broadcast %cst_86 : f32 to vector<8x32xf32>
    %215 = arith.subf %214, %213 : vector<8x32xf32>
    %216 = math.exp %215 : vector<8x32xf32>
    %cst_87 = arith.constant 0.000000e+00 : f32
    %217 = vector.broadcast %cst_87 : f32 to vector<8x32xf32>
    %218 = arith.cmpf oge, %211, %217 : vector<8x32xf32>
    %cst_88 = arith.constant 1.000000e+00 : f32
    %219 = vector.broadcast %cst_88 : f32 to vector<8x32xf32>
    %220 = arith.select %218, %219, %216 : vector<8x32xi1>, vector<8x32xf32>
    %cst_89 = arith.constant 1.000000e+00 : f32
    %221 = vector.broadcast %cst_89 : f32 to vector<8x32xf32>
    %222 = arith.select %218, %216, %221 : vector<8x32xi1>, vector<8x32xf32>
    %223 = arith.mulf %220, %171 : vector<8x32xf32>
    %224 = arith.mulf %222, %180 : vector<8x32xf32>
    %225 = arith.addf %223, %224 : vector<8x32xf32>
    %226 = arith.mulf %220, %173 : vector<8x32xf32>
    %227 = arith.addf %226, %222 : vector<8x32xf32>
    %c4_i32 = arith.constant 4 : i32
    %228 = arith.index_cast %c4_i32 : i32 to index
    %c0_90 = arith.constant 0 : index
    %c0_91 = arith.constant 0 : index
    %c0_92 = arith.constant 0 : index
    %229 = vector.load %arg5[%228, %c0_90, %c0_91, %c0_92] : memref<8x1x8x32xf32, #tpu.memory_space<vmem>>, vector<1x1x8x32xf32>
    %230 = vector.shape_cast %229 : vector<1x1x8x32xf32> to vector<8x32xf32>
    %231 = arith.index_cast %c4_i32 : i32 to index
    %c0_93 = arith.constant 0 : index
    %c0_94 = arith.constant 0 : index
    %c0_95 = arith.constant 0 : index
    %232 = vector.load %arg6[%231, %c0_93, %c0_94, %c0_95] : memref<8x1x8x32xbf16, #tpu.memory_space<vmem>>, vector<1x1x8x32xbf16>
    %233 = vector.shape_cast %232 : vector<1x1x8x32xbf16> to vector<8x32xbf16>
    %234 = arith.extf %233 : vector<8x32xbf16> to vector<8x32xf32>
    %235 = arith.index_cast %c4_i32 : i32 to index
    %c0_96 = arith.constant 0 : index
    %c0_97 = arith.constant 0 : index
    %c0_98 = arith.constant 0 : index
    %236 = vector.load %arg7[%235, %c0_96, %c0_97, %c0_98] : memref<8x1x8x32xbf16, #tpu.memory_space<vmem>>, vector<1x1x8x32xbf16>
    %237 = vector.shape_cast %236 : vector<1x1x8x32xbf16> to vector<8x32xbf16>
    %238 = arith.addf %8, %230 : vector<8x32xf32>
    %239 = arith.subf %212, %238 : vector<8x32xf32>
    %240 = math.absf %239 : vector<8x32xf32>
    %cst_99 = arith.constant 0.000000e+00 : f32
    %241 = vector.broadcast %cst_99 : f32 to vector<8x32xf32>
    %242 = arith.subf %241, %240 : vector<8x32xf32>
    %243 = math.exp %242 : vector<8x32xf32>
    %cst_100 = arith.constant 0.000000e+00 : f32
    %244 = vector.broadcast %cst_100 : f32 to vector<8x32xf32>
    %245 = arith.cmpf oge, %239, %244 : vector<8x32xf32>
    %cst_101 = arith.constant 1.000000e+00 : f32
    %246 = vector.broadcast %cst_101 : f32 to vector<8x32xf32>
    %247 = arith.select %245, %246, %243 : vector<8x32xi1>, vector<8x32xf32>
    %cst_102 = arith.constant 1.000000e+00 : f32
    %248 = vector.broadcast %cst_102 : f32 to vector<8x32xf32>
    %249 = arith.select %245, %243, %248 : vector<8x32xi1>, vector<8x32xf32>
    %250 = arith.mulf %247, %225 : vector<8x32xf32>
    %251 = arith.mulf %249, %234 : vector<8x32xf32>
    %252 = arith.addf %250, %251 : vector<8x32xf32>
    %253 = arith.mulf %247, %227 : vector<8x32xf32>
    %254 = arith.addf %253, %249 : vector<8x32xf32>
    %255 = tpu.reciprocal %254 {approx = true} : vector<8x32xf32> -> vector<8x32xf32>
    %256 = arith.mulf %252, %255 : vector<8x32xf32>
    %257 = arith.extf %237 : vector<8x32xbf16> to vector<8x32xf32>
    %258 = arith.mulf %257, %256 : vector<8x32xf32>
    %259 = arith.truncf %258 : vector<8x32xf32> to vector<8x32xbf16>
    %260 = arith.index_cast %c4_i32 : i32 to index
    %c0_103 = arith.constant 0 : index
    %c0_104 = arith.constant 0 : index
    %c0_105 = arith.constant 0 : index
    %261 = vector.load %arg8[%260, %c0_103, %c0_104, %c0_105] : memref<8x1x8x32xbf16, #tpu.memory_space<vmem>>, vector<1x1x8x32xbf16>
    %262 = vector.shape_cast %261 : vector<1x1x8x32xbf16> to vector<8x32xbf16>
    %263 = vector.shape_cast %259 : vector<8x32xbf16> to vector<1x1x8x32xbf16>
    tpu.vector_store %arg8[%260, %c0_103, %c0_104, %c0_105], %263 {strides = array<i32>} : memref<8x1x8x32xbf16, #tpu.memory_space<vmem>>, vector<1x1x8x32xbf16>,
    %264 = arith.addf %5, %212 : vector<8x32xf32>
    %265 = arith.subf %264, %230 : vector<8x32xf32>
    %266 = arith.maximumf %264, %230 : vector<8x32xf32>
    %267 = math.absf %265 : vector<8x32xf32>
    %cst_106 = arith.constant 0.000000e+00 : f32
    %268 = vector.broadcast %cst_106 : f32 to vector<8x32xf32>
    %269 = arith.subf %268, %267 : vector<8x32xf32>
    %270 = math.exp %269 : vector<8x32xf32>
    %cst_107 = arith.constant 0.000000e+00 : f32
    %271 = vector.broadcast %cst_107 : f32 to vector<8x32xf32>
    %272 = arith.cmpf oge, %265, %271 : vector<8x32xf32>
    %cst_108 = arith.constant 1.000000e+00 : f32
    %273 = vector.broadcast %cst_108 : f32 to vector<8x32xf32>
    %274 = arith.select %272, %273, %270 : vector<8x32xi1>, vector<8x32xf32>
    %cst_109 = arith.constant 1.000000e+00 : f32
    %275 = vector.broadcast %cst_109 : f32 to vector<8x32xf32>
    %276 = arith.select %272, %270, %275 : vector<8x32xi1>, vector<8x32xf32>
    %277 = arith.mulf %274, %225 : vector<8x32xf32>
    %278 = arith.mulf %276, %234 : vector<8x32xf32>
    %279 = arith.addf %277, %278 : vector<8x32xf32>
    %280 = arith.mulf %274, %227 : vector<8x32xf32>
    %281 = arith.addf %280, %276 : vector<8x32xf32>
    %c5_i32 = arith.constant 5 : i32
    %282 = arith.index_cast %c5_i32 : i32 to index
    %c0_110 = arith.constant 0 : index
    %c0_111 = arith.constant 0 : index
    %c0_112 = arith.constant 0 : index
    %283 = vector.load %arg5[%282, %c0_110, %c0_111, %c0_112] : memref<8x1x8x32xf32, #tpu.memory_space<vmem>>, vector<1x1x8x32xf32>
    %284 = vector.shape_cast %283 : vector<1x1x8x32xf32> to vector<8x32xf32>
    %285 = arith.index_cast %c5_i32 : i32 to index
    %c0_113 = arith.constant 0 : index
    %c0_114 = arith.constant 0 : index
    %c0_115 = arith.constant 0 : index
    %286 = vector.load %arg6[%285, %c0_113, %c0_114, %c0_115] : memref<8x1x8x32xbf16, #tpu.memory_space<vmem>>, vector<1x1x8x32xbf16>
    %287 = vector.shape_cast %286 : vector<1x1x8x32xbf16> to vector<8x32xbf16>
    %288 = arith.extf %287 : vector<8x32xbf16> to vector<8x32xf32>
    %289 = arith.index_cast %c5_i32 : i32 to index
    %c0_116 = arith.constant 0 : index
    %c0_117 = arith.constant 0 : index
    %c0_118 = arith.constant 0 : index
    %290 = vector.load %arg7[%289, %c0_116, %c0_117, %c0_118] : memref<8x1x8x32xbf16, #tpu.memory_space<vmem>>, vector<1x1x8x32xbf16>
    %291 = vector.shape_cast %290 : vector<1x1x8x32xbf16> to vector<8x32xbf16>
    %292 = arith.addf %8, %284 : vector<8x32xf32>
    %293 = arith.subf %266, %292 : vector<8x32xf32>
    %294 = math.absf %293 : vector<8x32xf32>
    %cst_119 = arith.constant 0.000000e+00 : f32
    %295 = vector.broadcast %cst_119 : f32 to vector<8x32xf32>
    %296 = arith.subf %295, %294 : vector<8x32xf32>
    %297 = math.exp %296 : vector<8x32xf32>
    %cst_120 = arith.constant 0.000000e+00 : f32
    %298 = vector.broadcast %cst_120 : f32 to vector<8x32xf32>
    %299 = arith.cmpf oge, %293, %298 : vector<8x32xf32>
    %cst_121 = arith.constant 1.000000e+00 : f32
    %300 = vector.broadcast %cst_121 : f32 to vector<8x32xf32>
    %301 = arith.select %299, %300, %297 : vector<8x32xi1>, vector<8x32xf32>
    %cst_122 = arith.constant 1.000000e+00 : f32
    %302 = vector.broadcast %cst_122 : f32 to vector<8x32xf32>
    %303 = arith.select %299, %297, %302 : vector<8x32xi1>, vector<8x32xf32>
    %304 = arith.mulf %301, %279 : vector<8x32xf32>
    %305 = arith.mulf %303, %288 : vector<8x32xf32>
    %306 = arith.addf %304, %305 : vector<8x32xf32>
    %307 = arith.mulf %301, %281 : vector<8x32xf32>
    %308 = arith.addf %307, %303 : vector<8x32xf32>
    %309 = tpu.reciprocal %308 {approx = true} : vector<8x32xf32> -> vector<8x32xf32>
    %310 = arith.mulf %306, %309 : vector<8x32xf32>
    %311 = arith.extf %291 : vector<8x32xbf16> to vector<8x32xf32>
    %312 = arith.mulf %311, %310 : vector<8x32xf32>
    %313 = arith.truncf %312 : vector<8x32xf32> to vector<8x32xbf16>
    %314 = arith.index_cast %c5_i32 : i32 to index
    %c0_123 = arith.constant 0 : index
    %c0_124 = arith.constant 0 : index
    %c0_125 = arith.constant 0 : index
    %315 = vector.load %arg8[%314, %c0_123, %c0_124, %c0_125] : memref<8x1x8x32xbf16, #tpu.memory_space<vmem>>, vector<1x1x8x32xbf16>
    %316 = vector.shape_cast %315 : vector<1x1x8x32xbf16> to vector<8x32xbf16>
    %317 = vector.shape_cast %313 : vector<8x32xbf16> to vector<1x1x8x32xbf16>
    tpu.vector_store %arg8[%314, %c0_123, %c0_124, %c0_125], %317 {strides = array<i32>} : memref<8x1x8x32xbf16, #tpu.memory_space<vmem>>, vector<1x1x8x32xbf16>,
    %318 = arith.addf %5, %266 : vector<8x32xf32>
    %319 = arith.subf %318, %284 : vector<8x32xf32>
    %320 = arith.maximumf %318, %284 : vector<8x32xf32>
    %321 = math.absf %319 : vector<8x32xf32>
    %cst_126 = arith.constant 0.000000e+00 : f32
    %322 = vector.broadcast %cst_126 : f32 to vector<8x32xf32>
    %323 = arith.subf %322, %321 : vector<8x32xf32>
    %324 = math.exp %323 : vector<8x32xf32>
    %cst_127 = arith.constant 0.000000e+00 : f32
    %325 = vector.broadcast %cst_127 : f32 to vector<8x32xf32>
    %326 = arith.cmpf oge, %319, %325 : vector<8x32xf32>
    %cst_128 = arith.constant 1.000000e+00 : f32
    %327 = vector.broadcast %cst_128 : f32 to vector<8x32xf32>
    %328 = arith.select %326, %327, %324 : vector<8x32xi1>, vector<8x32xf32>
    %cst_129 = arith.constant 1.000000e+00 : f32
    %329 = vector.broadcast %cst_129 : f32 to vector<8x32xf32>
    %330 = arith.select %326, %324, %329 : vector<8x32xi1>, vector<8x32xf32>
    %331 = arith.mulf %328, %279 : vector<8x32xf32>
    %332 = arith.mulf %330, %288 : vector<8x32xf32>
    %333 = arith.addf %331, %332 : vector<8x32xf32>
    %334 = arith.mulf %328, %281 : vector<8x32xf32>
    %335 = arith.addf %334, %330 : vector<8x32xf32>
    %c6_i32 = arith.constant 6 : i32
    %336 = arith.index_cast %c6_i32 : i32 to index
    %c0_130 = arith.constant 0 : index
    %c0_131 = arith.constant 0 : index
    %c0_132 = arith.constant 0 : index
    %337 = vector.load %arg5[%336, %c0_130, %c0_131, %c0_132] : memref<8x1x8x32xf32, #tpu.memory_space<vmem>>, vector<1x1x8x32xf32>
    %338 = vector.shape_cast %337 : vector<1x1x8x32xf32> to vector<8x32xf32>
    %339 = arith.index_cast %c6_i32 : i32 to index
    %c0_133 = arith.constant 0 : index
    %c0_134 = arith.constant 0 : index
    %c0_135 = arith.constant 0 : index
    %340 = vector.load %arg6[%339, %c0_133, %c0_134, %c0_135] : memref<8x1x8x32xbf16, #tpu.memory_space<vmem>>, vector<1x1x8x32xbf16>
    %341 = vector.shape_cast %340 : vector<1x1x8x32xbf16> to vector<8x32xbf16>
    %342 = arith.extf %341 : vector<8x32xbf16> to vector<8x32xf32>
    %343 = arith.index_cast %c6_i32 : i32 to index
    %c0_136 = arith.constant 0 : index
    %c0_137 = arith.constant 0 : index
    %c0_138 = arith.constant 0 : index
    %344 = vector.load %arg7[%343, %c0_136, %c0_137, %c0_138] : memref<8x1x8x32xbf16, #tpu.memory_space<vmem>>, vector<1x1x8x32xbf16>
    %345 = vector.shape_cast %344 : vector<1x1x8x32xbf16> to vector<8x32xbf16>
    %346 = arith.addf %8, %338 : vector<8x32xf32>
    %347 = arith.subf %320, %346 : vector<8x32xf32>
    %348 = math.absf %347 : vector<8x32xf32>
    %cst_139 = arith.constant 0.000000e+00 : f32
    %349 = vector.broadcast %cst_139 : f32 to vector<8x32xf32>
    %350 = arith.subf %349, %348 : vector<8x32xf32>
    %351 = math.exp %350 : vector<8x32xf32>
    %cst_140 = arith.constant 0.000000e+00 : f32
    %352 = vector.broadcast %cst_140 : f32 to vector<8x32xf32>
    %353 = arith.cmpf oge, %347, %352 : vector<8x32xf32>
    %cst_141 = arith.constant 1.000000e+00 : f32
    %354 = vector.broadcast %cst_141 : f32 to vector<8x32xf32>
    %355 = arith.select %353, %354, %351 : vector<8x32xi1>, vector<8x32xf32>
    %cst_142 = arith.constant 1.000000e+00 : f32
    %356 = vector.broadcast %cst_142 : f32 to vector<8x32xf32>
    %357 = arith.select %353, %351, %356 : vector<8x32xi1>, vector<8x32xf32>
    %358 = arith.mulf %355, %333 : vector<8x32xf32>
    %359 = arith.mulf %357, %342 : vector<8x32xf32>
    %360 = arith.addf %358, %359 : vector<8x32xf32>
    %361 = arith.mulf %355, %335 : vector<8x32xf32>
    %362 = arith.addf %361, %357 : vector<8x32xf32>
    %363 = tpu.reciprocal %362 {approx = true} : vector<8x32xf32> -> vector<8x32xf32>
    %364 = arith.mulf %360, %363 : vector<8x32xf32>
    %365 = arith.extf %345 : vector<8x32xbf16> to vector<8x32xf32>
    %366 = arith.mulf %365, %364 : vector<8x32xf32>
    %367 = arith.truncf %366 : vector<8x32xf32> to vector<8x32xbf16>
    %368 = arith.index_cast %c6_i32 : i32 to index
    %c0_143 = arith.constant 0 : index
    %c0_144 = arith.constant 0 : index
    %c0_145 = arith.constant 0 : index
    %369 = vector.load %arg8[%368, %c0_143, %c0_144, %c0_145] : memref<8x1x8x32xbf16, #tpu.memory_space<vmem>>, vector<1x1x8x32xbf16>
    %370 = vector.shape_cast %369 : vector<1x1x8x32xbf16> to vector<8x32xbf16>
    %371 = vector.shape_cast %367 : vector<8x32xbf16> to vector<1x1x8x32xbf16>
    tpu.vector_store %arg8[%368, %c0_143, %c0_144, %c0_145], %371 {strides = array<i32>} : memref<8x1x8x32xbf16, #tpu.memory_space<vmem>>, vector<1x1x8x32xbf16>,
    %372 = arith.addf %5, %320 : vector<8x32xf32>
    %373 = arith.subf %372, %338 : vector<8x32xf32>
    %374 = arith.maximumf %372, %338 : vector<8x32xf32>
    %375 = math.absf %373 : vector<8x32xf32>
    %cst_146 = arith.constant 0.000000e+00 : f32
    %376 = vector.broadcast %cst_146 : f32 to vector<8x32xf32>
    %377 = arith.subf %376, %375 : vector<8x32xf32>
    %378 = math.exp %377 : vector<8x32xf32>
    %cst_147 = arith.constant 0.000000e+00 : f32
    %379 = vector.broadcast %cst_147 : f32 to vector<8x32xf32>
    %380 = arith.cmpf oge, %373, %379 : vector<8x32xf32>
    %cst_148 = arith.constant 1.000000e+00 : f32
    %381 = vector.broadcast %cst_148 : f32 to vector<8x32xf32>
    %382 = arith.select %380, %381, %378 : vector<8x32xi1>, vector<8x32xf32>
    %cst_149 = arith.constant 1.000000e+00 : f32
    %383 = vector.broadcast %cst_149 : f32 to vector<8x32xf32>
    %384 = arith.select %380, %378, %383 : vector<8x32xi1>, vector<8x32xf32>
    %385 = arith.mulf %382, %333 : vector<8x32xf32>
    %386 = arith.mulf %384, %342 : vector<8x32xf32>
    %387 = arith.addf %385, %386 : vector<8x32xf32>
    %388 = arith.mulf %382, %335 : vector<8x32xf32>
    %389 = arith.addf %388, %384 : vector<8x32xf32>
    %c7_i32 = arith.constant 7 : i32
    %390 = arith.index_cast %c7_i32 : i32 to index
    %c0_150 = arith.constant 0 : index
    %c0_151 = arith.constant 0 : index
    %c0_152 = arith.constant 0 : index
    %391 = vector.load %arg5[%390, %c0_150, %c0_151, %c0_152] : memref<8x1x8x32xf32, #tpu.memory_space<vmem>>, vector<1x1x8x32xf32>
    %392 = vector.shape_cast %391 : vector<1x1x8x32xf32> to vector<8x32xf32>
    %393 = arith.index_cast %c7_i32 : i32 to index
    %c0_153 = arith.constant 0 : index
    %c0_154 = arith.constant 0 : index
    %c0_155 = arith.constant 0 : index
    %394 = vector.load %arg6[%393, %c0_153, %c0_154, %c0_155] : memref<8x1x8x32xbf16, #tpu.memory_space<vmem>>, vector<1x1x8x32xbf16>
    %395 = vector.shape_cast %394 : vector<1x1x8x32xbf16> to vector<8x32xbf16>
    %396 = arith.extf %395 : vector<8x32xbf16> to vector<8x32xf32>
    %397 = arith.index_cast %c7_i32 : i32 to index
    %c0_156 = arith.constant 0 : index
    %c0_157 = arith.constant 0 : index
    %c0_158 = arith.constant 0 : index
    %398 = vector.load %arg7[%397, %c0_156, %c0_157, %c0_158] : memref<8x1x8x32xbf16, #tpu.memory_space<vmem>>, vector<1x1x8x32xbf16>
    %399 = vector.shape_cast %398 : vector<1x1x8x32xbf16> to vector<8x32xbf16>
    %400 = arith.addf %8, %392 : vector<8x32xf32>
    %401 = arith.subf %374, %400 : vector<8x32xf32>
    %402 = math.absf %401 : vector<8x32xf32>
    %cst_159 = arith.constant 0.000000e+00 : f32
    %403 = vector.broadcast %cst_159 : f32 to vector<8x32xf32>
    %404 = arith.subf %403, %402 : vector<8x32xf32>
    %405 = math.exp %404 : vector<8x32xf32>
    %cst_160 = arith.constant 0.000000e+00 : f32
    %406 = vector.broadcast %cst_160 : f32 to vector<8x32xf32>
    %407 = arith.cmpf oge, %401, %406 : vector<8x32xf32>
    %cst_161 = arith.constant 1.000000e+00 : f32
    %408 = vector.broadcast %cst_161 : f32 to vector<8x32xf32>
    %409 = arith.select %407, %408, %405 : vector<8x32xi1>, vector<8x32xf32>
    %cst_162 = arith.constant 1.000000e+00 : f32
    %410 = vector.broadcast %cst_162 : f32 to vector<8x32xf32>
    %411 = arith.select %407, %405, %410 : vector<8x32xi1>, vector<8x32xf32>
    %412 = arith.mulf %409, %387 : vector<8x32xf32>
    %413 = arith.mulf %411, %396 : vector<8x32xf32>
    %414 = arith.addf %412, %413 : vector<8x32xf32>
    %415 = arith.mulf %409, %389 : vector<8x32xf32>
    %416 = arith.addf %415, %411 : vector<8x32xf32>
    %417 = tpu.reciprocal %416 {approx = true} : vector<8x32xf32> -> vector<8x32xf32>
    %418 = arith.mulf %414, %417 : vector<8x32xf32>
    %419 = arith.extf %399 : vector<8x32xbf16> to vector<8x32xf32>
    %420 = arith.mulf %419, %418 : vector<8x32xf32>
    %421 = arith.truncf %420 : vector<8x32xf32> to vector<8x32xbf16>
    %422 = arith.index_cast %c7_i32 : i32 to index
    %c0_163 = arith.constant 0 : index
    %c0_164 = arith.constant 0 : index
    %c0_165 = arith.constant 0 : index
    %423 = vector.load %arg8[%422, %c0_163, %c0_164, %c0_165] : memref<8x1x8x32xbf16, #tpu.memory_space<vmem>>, vector<1x1x8x32xbf16>
    %424 = vector.shape_cast %423 : vector<1x1x8x32xbf16> to vector<8x32xbf16>
    %425 = vector.shape_cast %421 : vector<8x32xbf16> to vector<1x1x8x32xbf16>
    tpu.vector_store %arg8[%422, %c0_163, %c0_164, %c0_165], %425 {strides = array<i32>} : memref<8x1x8x32xbf16, #tpu.memory_space<vmem>>, vector<1x1x8x32xbf16>,
    %426 = arith.addf %5, %374 : vector<8x32xf32>
    %427 = arith.subf %426, %392 : vector<8x32xf32>
    %428 = arith.maximumf %426, %392 : vector<8x32xf32>
    %429 = math.absf %427 : vector<8x32xf32>
    %cst_166 = arith.constant 0.000000e+00 : f32
    %430 = vector.broadcast %cst_166 : f32 to vector<8x32xf32>
    %431 = arith.subf %430, %429 : vector<8x32xf32>
    %432 = math.exp %431 : vector<8x32xf32>
    %cst_167 = arith.constant 0.000000e+00 : f32
    %433 = vector.broadcast %cst_167 : f32 to vector<8x32xf32>
    %434 = arith.cmpf oge, %427, %433 : vector<8x32xf32>
    %cst_168 = arith.constant 1.000000e+00 : f32
    %435 = vector.broadcast %cst_168 : f32 to vector<8x32xf32>
    %436 = arith.select %434, %435, %432 : vector<8x32xi1>, vector<8x32xf32>
    %cst_169 = arith.constant 1.000000e+00 : f32
    %437 = vector.broadcast %cst_169 : f32 to vector<8x32xf32>
    %438 = arith.select %434, %432, %437 : vector<8x32xi1>, vector<8x32xf32>
    %439 = arith.mulf %436, %387 : vector<8x32xf32>
    %440 = arith.mulf %438, %396 : vector<8x32xf32>
    %441 = arith.addf %439, %440 : vector<8x32xf32>
    %442 = arith.mulf %436, %389 : vector<8x32xf32>
    %443 = arith.addf %442, %438 : vector<8x32xf32>
    %c8_i32 = arith.constant 8 : i32
    %c0_170 = arith.constant 0 : index
    %c0_171 = arith.constant 0 : index
    %444 = vector.load %arg9[%c0_170, %c0_171] : memref<8x32xf32, #tpu.memory_space<vmem>>, vector<8x32xf32>
    tpu.vector_store %arg9[%c0_170, %c0_171], %441 {strides = array<i32>} : memref<8x32xf32, #tpu.memory_space<vmem>>, vector<8x32xf32>,
    %c0_172 = arith.constant 0 : index
    %c0_173 = arith.constant 0 : index
    %445 = vector.load %arg10[%c0_172, %c0_173] : memref<8x32xf32, #tpu.memory_space<vmem>>, vector<8x32xf32>
    tpu.vector_store %arg10[%c0_172, %c0_173], %443 {strides = array<i32>} : memref<8x32xf32, #tpu.memory_space<vmem>>, vector<8x32xf32>,
    %c0_174 = arith.constant 0 : index
    %c0_175 = arith.constant 0 : index
    %446 = vector.load %arg11[%c0_174, %c0_175] : memref<8x32xf32, #tpu.memory_space<vmem>>, vector<8x32xf32>
    tpu.vector_store %arg11[%c0_174, %c0_175], %428 {strides = array<i32>} : memref<8x32xf32, #tpu.memory_space<vmem>>, vector<8x32xf32>,
    return
  }
  func.func @transform_0(%arg0: i32, %arg1: i32, %arg2: i32) -> (i32, i32) {
    %c0_i32 = arith.constant 0 : i32
    %c0_i32_0 = arith.constant 0 : i32
    return %c0_i32, %arg1 : i32, i32
  }
  func.func @transform_1(%arg0: i32, %arg1: i32, %arg2: i32) -> (i32, i32) {
    %c0_i32 = arith.constant 0 : i32
    %c0_i32_0 = arith.constant 0 : i32
    return %c0_i32, %arg1 : i32, i32
  }
  func.func @transform_2(%arg0: i32, %arg1: i32, %arg2: i32) -> (i32, i32, i32, i32) {
    %c0_i32 = arith.constant 0 : i32
    %c0_i32_0 = arith.constant 0 : i32
    return %arg2, %arg0, %c0_i32, %arg1 : i32, i32, i32, i32
  }
  func.func @transform_3(%arg0: i32, %arg1: i32, %arg2: i32) -> (i32, i32, i32, i32) {
    %c0_i32 = arith.constant 0 : i32
    %c0_i32_0 = arith.constant 0 : i32
    return %arg2, %arg0, %c0_i32, %arg1 : i32, i32, i32, i32
  }
  func.func @transform_4(%arg0: i32, %arg1: i32, %arg2: i32) -> (i32, i32, i32, i32) {
    %c0_i32 = arith.constant 0 : i32
    %c0_i32_0 = arith.constant 0 : i32
    return %arg2, %arg0, %c0_i32, %arg1 : i32, i32, i32, i32
  }
  func.func @transform_5(%arg0: i32, %arg1: i32, %arg2: i32) -> (i32, i32, i32, i32) {
    %c0_i32 = arith.constant 0 : i32
    %c0_i32_0 = arith.constant 0 : i32
    return %arg2, %arg0, %c0_i32, %arg1 : i32, i32, i32, i32
  }
}

module attributes {stable_mosaic.version = 11 : i64} {
  func.func @proj_kernel(%arg0: i32, %arg1: i32, %arg2: i32, %arg3: memref<64x32xbf16, #tpu.memory_space<vmem>>, %arg4: memref<64x32xbf16, #tpu.memory_space<vmem>>, %arg5: memref<1x32xbf16, #tpu.memory_space<vmem>>, %arg6: memref<1x32xbf16, #tpu.memory_space<vmem>>, %arg7: memref<1x32xbf16, #tpu.memory_space<vmem>>, %arg8: memref<32x32xbf16, #tpu.memory_space<vmem>>, %arg9: memref<32x32xbf16, #tpu.memory_space<vmem>>, %arg10: memref<32x32xbf16, #tpu.memory_space<vmem>>, %arg11: memref<64x32xf32, #tpu.memory_space<vmem>>, %arg12: memref<64x32xbf16, #tpu.memory_space<vmem>>, %arg13: memref<64x32xbf16, #tpu.memory_space<vmem>>, %arg14: memref<64x32xf32, #tpu.memory_space<vmem>>, %arg15: memref<64x32xf32, #tpu.memory_space<vmem>>, %arg16: memref<64x32xf32, #tpu.memory_space<vmem>>) attributes {dimension_semantics = [#tpu.dimension_semantics<parallel>, #tpu.dimension_semantics<parallel>, #tpu.dimension_semantics<arbitrary>], iteration_bounds = array<i64: 1, 1, 1>, scalar_prefetch = 0 : i64, scratch_operands = 3 : i64, tpu.core_type = #tpu.core_type<tc>, window_params = [{transform_indices = @transform_0, window_bounds = array<i64: 64, 32>}, {transform_indices = @transform_1, window_bounds = array<i64: 64, 32>}, {transform_indices = @transform_2, window_bounds = array<i64: 1, 32>}, {transform_indices = @transform_3, window_bounds = array<i64: 1, 32>}, {transform_indices = @transform_4, window_bounds = array<i64: 1, 32>}, {transform_indices = @transform_5, window_bounds = array<i64: 32, 32>}, {transform_indices = @transform_6, window_bounds = array<i64: 32, 32>}, {transform_indices = @transform_7, window_bounds = array<i64: 32, 32>}, {transform_indices = @transform_8, window_bounds = array<i64: 64, 32>}, {transform_indices = @transform_9, window_bounds = array<i64: 64, 32>}, {transform_indices = @transform_10, window_bounds = array<i64: 64, 32>}]} {
    %c0_i32 = arith.constant 0 : i32
    %0 = arith.cmpi eq, %arg2, %c0_i32 : i32
    %1 = arith.extui %0 : i1 to i32
    %c0_i32_0 = arith.constant 0 : i32
    %2 = arith.cmpi ne, %1, %c0_i32_0 : i32
    scf.if %2 {
      %cst_32 = arith.constant 0.000000e+00 : f32
      %36 = vector.broadcast %cst_32 : f32 to vector<64x32xf32>
      %c0_33 = arith.constant 0 : index
      %c0_34 = arith.constant 0 : index
      %37 = vector.load %arg14[%c0_33, %c0_34] : memref<64x32xf32, #tpu.memory_space<vmem>>, vector<64x32xf32>
      tpu.vector_store %arg14[%c0_33, %c0_34], %36 {strides = array<i32>} : memref<64x32xf32, #tpu.memory_space<vmem>>, vector<64x32xf32>,
      %cst_35 = arith.constant 0.000000e+00 : f32
      %38 = vector.broadcast %cst_35 : f32 to vector<64x32xf32>
      %c0_36 = arith.constant 0 : index
      %c0_37 = arith.constant 0 : index
      %39 = vector.load %arg15[%c0_36, %c0_37] : memref<64x32xf32, #tpu.memory_space<vmem>>, vector<64x32xf32>
      tpu.vector_store %arg15[%c0_36, %c0_37], %38 {strides = array<i32>} : memref<64x32xf32, #tpu.memory_space<vmem>>, vector<64x32xf32>,
      %cst_38 = arith.constant 0.000000e+00 : f32
      %40 = vector.broadcast %cst_38 : f32 to vector<64x32xf32>
      %c0_39 = arith.constant 0 : index
      %c0_40 = arith.constant 0 : index
      %41 = vector.load %arg16[%c0_39, %c0_40] : memref<64x32xf32, #tpu.memory_space<vmem>>, vector<64x32xf32>
      tpu.vector_store %arg16[%c0_39, %c0_40], %40 {strides = array<i32>} : memref<64x32xf32, #tpu.memory_space<vmem>>, vector<64x32xf32>,
    } else {
    }
    %c0 = arith.constant 0 : index
    %c0_1 = arith.constant 0 : index
    %3 = vector.load %arg3[%c0, %c0_1] : memref<64x32xbf16, #tpu.memory_space<vmem>>, vector<64x32xbf16>
    %c0_2 = arith.constant 0 : index
    %c0_3 = arith.constant 0 : index
    %4 = vector.load %arg4[%c0_2, %c0_3] : memref<64x32xbf16, #tpu.memory_space<vmem>>, vector<64x32xbf16>
    %5 = arith.subf %3, %4 : vector<64x32xbf16>
    %c0_4 = arith.constant 0 : index
    %c0_5 = arith.constant 0 : index
    %6 = vector.load %arg5[%c0_4, %c0_5] : memref<1x32xbf16, #tpu.memory_space<vmem>>, vector<1x32xbf16>
    %7 = vector.broadcast %6 : vector<1x32xbf16> to vector<64x32xbf16>
    %8 = arith.mulf %5, %7 : vector<64x32xbf16>
    %9 = arith.addf %4, %8 : vector<64x32xbf16>
    %c0_6 = arith.constant 0 : index
    %c0_7 = arith.constant 0 : index
    %10 = vector.load %arg6[%c0_6, %c0_7] : memref<1x32xbf16, #tpu.memory_space<vmem>>, vector<1x32xbf16>
    %11 = vector.broadcast %10 : vector<1x32xbf16> to vector<64x32xbf16>
    %12 = arith.mulf %5, %11 : vector<64x32xbf16>
    %13 = arith.addf %4, %12 : vector<64x32xbf16>
    %c0_8 = arith.constant 0 : index
    %c0_9 = arith.constant 0 : index
    %14 = vector.load %arg7[%c0_8, %c0_9] : memref<1x32xbf16, #tpu.memory_space<vmem>>, vector<1x32xbf16>
    %15 = vector.broadcast %14 : vector<1x32xbf16> to vector<64x32xbf16>
    %16 = arith.mulf %5, %15 : vector<64x32xbf16>
    %17 = arith.addf %4, %16 : vector<64x32xbf16>
    %c0_10 = arith.constant 0 : index
    %c0_11 = arith.constant 0 : index
    %18 = vector.load %arg14[%c0_10, %c0_11] : memref<64x32xf32, #tpu.memory_space<vmem>>, vector<64x32xf32>
    %c0_12 = arith.constant 0 : index
    %c0_13 = arith.constant 0 : index
    %19 = vector.load %arg8[%c0_12, %c0_13] : memref<32x32xbf16, #tpu.memory_space<vmem>>, vector<32x32xbf16>
    %cst = arith.constant dense<0.000000e+00> : vector<64x32xf32>
    %20 = tpu.matmul %9, %19, %cst {dimension_numbers = #tpu.dot_dimension_numbers<[1], [0], [0], [1], [0, 0, 1, 1], [], []>} : vector<64x32xbf16>, vector<32x32xbf16>, vector<64x32xf32> -> vector<64x32xf32>
    %21 = arith.addf %18, %20 : vector<64x32xf32>
    %c0_14 = arith.constant 0 : index
    %c0_15 = arith.constant 0 : index
    %22 = vector.load %arg14[%c0_14, %c0_15] : memref<64x32xf32, #tpu.memory_space<vmem>>, vector<64x32xf32>
    tpu.vector_store %arg14[%c0_14, %c0_15], %21 {strides = array<i32>} : memref<64x32xf32, #tpu.memory_space<vmem>>, vector<64x32xf32>,
    %c0_16 = arith.constant 0 : index
    %c0_17 = arith.constant 0 : index
    %23 = vector.load %arg15[%c0_16, %c0_17] : memref<64x32xf32, #tpu.memory_space<vmem>>, vector<64x32xf32>
    %c0_18 = arith.constant 0 : index
    %c0_19 = arith.constant 0 : index
    %24 = vector.load %arg9[%c0_18, %c0_19] : memref<32x32xbf16, #tpu.memory_space<vmem>>, vector<32x32xbf16>
    %cst_20 = arith.constant dense<0.000000e+00> : vector<64x32xf32>
    %25 = tpu.matmul %13, %24, %cst_20 {dimension_numbers = #tpu.dot_dimension_numbers<[1], [0], [0], [1], [0, 0, 1, 1], [], []>} : vector<64x32xbf16>, vector<32x32xbf16>, vector<64x32xf32> -> vector<64x32xf32>
    %26 = arith.addf %23, %25 : vector<64x32xf32>
    %c0_21 = arith.constant 0 : index
    %c0_22 = arith.constant 0 : index
    %27 = vector.load %arg15[%c0_21, %c0_22] : memref<64x32xf32, #tpu.memory_space<vmem>>, vector<64x32xf32>
    tpu.vector_store %arg15[%c0_21, %c0_22], %26 {strides = array<i32>} : memref<64x32xf32, #tpu.memory_space<vmem>>, vector<64x32xf32>,
    %c0_23 = arith.constant 0 : index
    %c0_24 = arith.constant 0 : index
    %28 = vector.load %arg16[%c0_23, %c0_24] : memref<64x32xf32, #tpu.memory_space<vmem>>, vector<64x32xf32>
    %c0_25 = arith.constant 0 : index
    %c0_26 = arith.constant 0 : index
    %29 = vector.load %arg10[%c0_25, %c0_26] : memref<32x32xbf16, #tpu.memory_space<vmem>>, vector<32x32xbf16>
    %cst_27 = arith.constant dense<0.000000e+00> : vector<64x32xf32>
    %30 = tpu.matmul %17, %29, %cst_27 {dimension_numbers = #tpu.dot_dimension_numbers<[1], [0], [0], [1], [0, 0, 1, 1], [], []>} : vector<64x32xbf16>, vector<32x32xbf16>, vector<64x32xf32> -> vector<64x32xf32>
    %31 = arith.addf %28, %30 : vector<64x32xf32>
    %c0_28 = arith.constant 0 : index
    %c0_29 = arith.constant 0 : index
    %32 = vector.load %arg16[%c0_28, %c0_29] : memref<64x32xf32, #tpu.memory_space<vmem>>, vector<64x32xf32>
    tpu.vector_store %arg16[%c0_28, %c0_29], %31 {strides = array<i32>} : memref<64x32xf32, #tpu.memory_space<vmem>>, vector<64x32xf32>,
    %c0_i32_30 = arith.constant 0 : i32
    %33 = arith.cmpi eq, %arg2, %c0_i32_30 : i32
    %34 = arith.extui %33 : i1 to i32
    %c0_i32_31 = arith.constant 0 : i32
    %35 = arith.cmpi ne, %34, %c0_i32_31 : i32
    scf.if %35 {
      %c0_32 = arith.constant 0 : index
      %c0_33 = arith.constant 0 : index
      %36 = vector.load %arg14[%c0_32, %c0_33] : memref<64x32xf32, #tpu.memory_space<vmem>>, vector<64x32xf32>
      %c0_34 = arith.constant 0 : index
      %c0_35 = arith.constant 0 : index
      %37 = vector.load %arg11[%c0_34, %c0_35] : memref<64x32xf32, #tpu.memory_space<vmem>>, vector<64x32xf32>
      tpu.vector_store %arg11[%c0_34, %c0_35], %36 {strides = array<i32>} : memref<64x32xf32, #tpu.memory_space<vmem>>, vector<64x32xf32>,
      %c0_36 = arith.constant 0 : index
      %c0_37 = arith.constant 0 : index
      %38 = vector.load %arg15[%c0_36, %c0_37] : memref<64x32xf32, #tpu.memory_space<vmem>>, vector<64x32xf32>
      %39 = arith.truncf %38 : vector<64x32xf32> to vector<64x32xbf16>
      %c0_38 = arith.constant 0 : index
      %c0_39 = arith.constant 0 : index
      %40 = vector.load %arg12[%c0_38, %c0_39] : memref<64x32xbf16, #tpu.memory_space<vmem>>, vector<64x32xbf16>
      tpu.vector_store %arg12[%c0_38, %c0_39], %39 {strides = array<i32>} : memref<64x32xbf16, #tpu.memory_space<vmem>>, vector<64x32xbf16>,
      %c0_40 = arith.constant 0 : index
      %c0_41 = arith.constant 0 : index
      %41 = vector.load %arg16[%c0_40, %c0_41] : memref<64x32xf32, #tpu.memory_space<vmem>>, vector<64x32xf32>
      %42 = arith.negf %41 : vector<64x32xf32>
      %43 = math.exp %42 : vector<64x32xf32>
      %cst_42 = arith.constant 1.000000e+00 : f32
      %44 = vector.broadcast %cst_42 : f32 to vector<64x32xf32>
      %45 = arith.addf %44, %43 : vector<64x32xf32>
      %46 = arith.divf %44, %45 : vector<64x32xf32>
      %47 = arith.truncf %46 : vector<64x32xf32> to vector<64x32xbf16>
      %c0_43 = arith.constant 0 : index
      %c0_44 = arith.constant 0 : index
      %48 = vector.load %arg13[%c0_43, %c0_44] : memref<64x32xbf16, #tpu.memory_space<vmem>>, vector<64x32xbf16>
      tpu.vector_store %arg13[%c0_43, %c0_44], %47 {strides = array<i32>} : memref<64x32xbf16, #tpu.memory_space<vmem>>, vector<64x32xbf16>,
    } else {
    }
    return
  }
  func.func @transform_0(%arg0: i32, %arg1: i32, %arg2: i32) -> (i32, i32) {
    %c0_i32 = arith.constant 0 : i32
    return %arg0, %arg2 : i32, i32
  }
  func.func @transform_1(%arg0: i32, %arg1: i32, %arg2: i32) -> (i32, i32) {
    %c0_i32 = arith.constant 0 : i32
    return %arg0, %arg2 : i32, i32
  }
  func.func @transform_2(%arg0: i32, %arg1: i32, %arg2: i32) -> (i32, i32) {
    %c0_i32 = arith.constant 0 : i32
    %c0_i32_0 = arith.constant 0 : i32
    return %c0_i32, %arg2 : i32, i32
  }
  func.func @transform_3(%arg0: i32, %arg1: i32, %arg2: i32) -> (i32, i32) {
    %c0_i32 = arith.constant 0 : i32
    %c0_i32_0 = arith.constant 0 : i32
    return %c0_i32, %arg2 : i32, i32
  }
  func.func @transform_4(%arg0: i32, %arg1: i32, %arg2: i32) -> (i32, i32) {
    %c0_i32 = arith.constant 0 : i32
    %c0_i32_0 = arith.constant 0 : i32
    return %c0_i32, %arg2 : i32, i32
  }
  func.func @transform_5(%arg0: i32, %arg1: i32, %arg2: i32) -> (i32, i32) {
    %c0_i32 = arith.constant 0 : i32
    return %arg2, %arg1 : i32, i32
  }
  func.func @transform_6(%arg0: i32, %arg1: i32, %arg2: i32) -> (i32, i32) {
    %c0_i32 = arith.constant 0 : i32
    return %arg2, %arg1 : i32, i32
  }
  func.func @transform_7(%arg0: i32, %arg1: i32, %arg2: i32) -> (i32, i32) {
    %c0_i32 = arith.constant 0 : i32
    return %arg2, %arg1 : i32, i32
  }
  func.func @transform_8(%arg0: i32, %arg1: i32, %arg2: i32) -> (i32, i32) {
    %c0_i32 = arith.constant 0 : i32
    return %arg0, %arg1 : i32, i32
  }
  func.func @transform_9(%arg0: i32, %arg1: i32, %arg2: i32) -> (i32, i32) {
    %c0_i32 = arith.constant 0 : i32
    return %arg0, %arg1 : i32, i32
  }
  func.func @transform_10(%arg0: i32, %arg1: i32, %arg2: i32) -> (i32, i32) {
    %c0_i32 = arith.constant 0 : i32
    return %arg0, %arg1 : i32, i32
  }
}

module attributes {stable_mosaic.version = 11 : i64} {
  func.func @out_kernel(%arg0: i32, %arg1: i32, %arg2: i32, %arg3: memref<64x32xbf16, #tpu.memory_space<vmem>>, %arg4: memref<32x32xbf16, #tpu.memory_space<vmem>>, %arg5: memref<64x32xf32, #tpu.memory_space<vmem>>, %arg6: memref<64x32xf32, #tpu.memory_space<vmem>>) attributes {dimension_semantics = [#tpu.dimension_semantics<parallel>, #tpu.dimension_semantics<parallel>, #tpu.dimension_semantics<arbitrary>], iteration_bounds = array<i64: 1, 1, 1>, scalar_prefetch = 0 : i64, scratch_operands = 1 : i64, tpu.core_type = #tpu.core_type<tc>, window_params = [{transform_indices = @transform_0, window_bounds = array<i64: 64, 32>}, {transform_indices = @transform_1, window_bounds = array<i64: 32, 32>}, {transform_indices = @transform_2, window_bounds = array<i64: 64, 32>}]} {
    %c0_i32 = arith.constant 0 : i32
    %0 = arith.cmpi eq, %arg2, %c0_i32 : i32
    %1 = arith.extui %0 : i1 to i32
    %c0_i32_0 = arith.constant 0 : i32
    %2 = arith.cmpi ne, %1, %c0_i32_0 : i32
    scf.if %2 {
      %cst_10 = arith.constant 0.000000e+00 : f32
      %12 = vector.broadcast %cst_10 : f32 to vector<64x32xf32>
      %c0_11 = arith.constant 0 : index
      %c0_12 = arith.constant 0 : index
      %13 = vector.load %arg6[%c0_11, %c0_12] : memref<64x32xf32, #tpu.memory_space<vmem>>, vector<64x32xf32>
      tpu.vector_store %arg6[%c0_11, %c0_12], %12 {strides = array<i32>} : memref<64x32xf32, #tpu.memory_space<vmem>>, vector<64x32xf32>,
    } else {
    }
    %c0 = arith.constant 0 : index
    %c0_1 = arith.constant 0 : index
    %3 = vector.load %arg6[%c0, %c0_1] : memref<64x32xf32, #tpu.memory_space<vmem>>, vector<64x32xf32>
    %c0_2 = arith.constant 0 : index
    %c0_3 = arith.constant 0 : index
    %4 = vector.load %arg3[%c0_2, %c0_3] : memref<64x32xbf16, #tpu.memory_space<vmem>>, vector<64x32xbf16>
    %c0_4 = arith.constant 0 : index
    %c0_5 = arith.constant 0 : index
    %5 = vector.load %arg4[%c0_4, %c0_5] : memref<32x32xbf16, #tpu.memory_space<vmem>>, vector<32x32xbf16>
    %cst = arith.constant dense<0.000000e+00> : vector<64x32xf32>
    %6 = tpu.matmul %4, %5, %cst {dimension_numbers = #tpu.dot_dimension_numbers<[1], [0], [0], [1], [0, 0, 1, 1], [], []>} : vector<64x32xbf16>, vector<32x32xbf16>, vector<64x32xf32> -> vector<64x32xf32>
    %7 = arith.addf %3, %6 : vector<64x32xf32>
    %c0_6 = arith.constant 0 : index
    %c0_7 = arith.constant 0 : index
    %8 = vector.load %arg6[%c0_6, %c0_7] : memref<64x32xf32, #tpu.memory_space<vmem>>, vector<64x32xf32>
    tpu.vector_store %arg6[%c0_6, %c0_7], %7 {strides = array<i32>} : memref<64x32xf32, #tpu.memory_space<vmem>>, vector<64x32xf32>,
    %c0_i32_8 = arith.constant 0 : i32
    %9 = arith.cmpi eq, %arg2, %c0_i32_8 : i32
    %10 = arith.extui %9 : i1 to i32
    %c0_i32_9 = arith.constant 0 : i32
    %11 = arith.cmpi ne, %10, %c0_i32_9 : i32
    scf.if %11 {
      %c0_10 = arith.constant 0 : index
      %c0_11 = arith.constant 0 : index
      %12 = vector.load %arg6[%c0_10, %c0_11] : memref<64x32xf32, #tpu.memory_space<vmem>>, vector<64x32xf32>
      %c0_12 = arith.constant 0 : index
      %c0_13 = arith.constant 0 : index
      %13 = vector.load %arg5[%c0_12, %c0_13] : memref<64x32xf32, #tpu.memory_space<vmem>>, vector<64x32xf32>
      tpu.vector_store %arg5[%c0_12, %c0_13], %12 {strides = array<i32>} : memref<64x32xf32, #tpu.memory_space<vmem>>, vector<64x32xf32>,
    } else {
    }
    return
  }
  func.func @transform_0(%arg0: i32, %arg1: i32, %arg2: i32) -> (i32, i32) {
    %c0_i32 = arith.constant 0 : i32
    return %arg0, %arg2 : i32, i32
  }
  func.func @transform_1(%arg0: i32, %arg1: i32, %arg2: i32) -> (i32, i32) {
    %c0_i32 = arith.constant 0 : i32
    return %arg2, %arg1 : i32, i32
  }
  func.func @transform_2(%arg0: i32, %arg1: i32, %arg2: i32) -> (i32, i32) {
    %c0_i32 = arith.constant 0 : i32
    return %arg0, %arg1 : i32, i32
  }
}

</mosaic_0001>

<llo_original>
// kernel: rwkv_timemix_forward.5
$region0: #{rwkv_timemix_forward.5}
  #allocation0 [shape = 'u32[]', space=smem, size = 0x4, offset = 0x4, fixed_abs, tag = 'smem constant byte address 0x4 - core index']
  #allocation1 [shape = 'u32[144,128]{1,0:T(1,128)}', space=vmem, size = 0x12000, scoped, tag = 'internal scratch']
  #allocation2 [shape = 'f32[64,32]{1,0:T(8,128)}', space=vmem, size = 0x8000, scoped, tag = 'scratch operand']
  %s0 = inlined_call_operand.vmem [shape: bf16[64,32], index: 0, kind: input, shape index: {}]
  %s1 = inlined_call_operand.vmem [shape: bf16[32,32], index: 1, kind: input, shape index: {}]
  %s2 = inlined_call_operand.vmem [shape: f32[64,32], index: 2, kind: output, shape index: {}]
  %s3 = sld [smem:[#allocation0]]
  $region26: #{rwkv_timemix_forward.5} parent=0
    _
  %s5 = ssub.s32 1, %s3
  %s6 = scalar_select 0, %s5, %s3
  // Predicated region
  $region2: #{rwkv_timemix_forward.5} parent=0 // pred_check
    _
  $region3: #{rwkv_timemix_forward.5} parent=0 // pred_check_branch
    %8 = sbr.rel (0) target = $region5
  $region4: #{rwkv_timemix_forward.5} parent=0 // pred_region
    _
  $region5: #{rwkv_timemix_forward.5} parent=0 // pred_fallthru
    _
  // Predicated region
  $region6: #{rwkv_timemix_forward.5} parent=0 // pred_check
    _
  $region7: #{rwkv_timemix_forward.5} parent=0 // pred_check_branch
    %10 = sbr.rel (0) target = $region9
  $region8: #{rwkv_timemix_forward.5} parent=0 // pred_region
    _
  $region9: #{rwkv_timemix_forward.5} parent=0 // pred_fallthru
    _
  %p12 = scmp.eq.s32.totalorder 0, 0
  // Predicated region
  $region10: #{rwkv_timemix_forward.5} parent=0 // pred_check
    %p13 = pneg %p12
  $region11: #{rwkv_timemix_forward.5} parent=0 // pred_check_branch
    %15 = sbr.rel (%p13) target = $region13
  $region12: #{rwkv_timemix_forward.5} parent=0 // pred_region
    %vm16 = vcmask 261120
    %17 = vst.msk [vmem:[#allocation2] sm:$0xff] %vm16, 0.0
    %18 = vst.msk [vmem:[#allocation2 + $0x8] sm:$0xff] %vm16, 0.0
    %19 = vst.msk [vmem:[#allocation2 + $0x10] sm:$0xff] %vm16, 0.0
    %20 = vst.msk [vmem:[#allocation2 + $0x18] sm:$0xff] %vm16, 0.0
    %21 = vst.msk [vmem:[#allocation2 + $0x20] sm:$0xff] %vm16, 0.0
    %22 = vst.msk [vmem:[#allocation2 + $0x28] sm:$0xff] %vm16, 0.0
    %23 = vst.msk [vmem:[#allocation2 + $0x30] sm:$0xff] %vm16, 0.0
    %24 = vst.msk [vmem:[#allocation2 + $0x38] sm:$0xff] %vm16, 0.0
  $region13: #{rwkv_timemix_forward.5} parent=0 // pred_fallthru
    _
  %v25 = vld [vmem:[#allocation2] sm:$0xff]
  %v26 = vld [vmem:[#allocation2 + $0x8] sm:$0xff]
  %v27 = vld [vmem:[#allocation2 + $0x10] sm:$0xff]
  %v28 = vld [vmem:[#allocation2 + $0x18] sm:$0xff]
  %v29 = vld [vmem:[#allocation2 + $0x20] sm:$0xff]
  %v30 = vld [vmem:[#allocation2 + $0x28] sm:$0xff]
  %v31 = vld [vmem:[#allocation2 + $0x30] sm:$0xff]
  %v32 = vld [vmem:[#allocation2 + $0x38] sm:$0xff]
  %v33 = vld [vmem:[%s0] sm:$0xf]
  %v34 = vld [vmem:[%s0 + $0x4] sm:$0xf]
  %v35 = vld [vmem:[%s0 + $0x8] sm:$0xf]
  %v36 = vld [vmem:[%s0 + $0xc] sm:$0xf]
  %v37 = vld [vmem:[%s0 + $0x10] sm:$0xf]
  %v38 = vld [vmem:[%s0 + $0x14] sm:$0xf]
  %v39 = vld [vmem:[%s0 + $0x18] sm:$0xf]
  %v40 = vld [vmem:[%s0 + $0x1c] sm:$0xf]
  %v41 = vld [vmem:[%s1] sm:$0xf]
  %v42 = vld [vmem:[%s1 + $0x4] sm:$0xf]
  %v43 = vld [vmem:[%s1 + $0x8] sm:$0xf]
  %v44 = vld [vmem:[%s1 + $0xc] sm:$0xf]
  %v53 = vunpack.c.l.b16 %v33
  %v54 = vunpack.c.l.b16 %v34
  %v55 = vunpack.c.l.b16 %v35
  %v56 = vunpack.c.l.b16 %v36
  %v57 = vunpack.c.l.b16 %v37
  %v58 = vunpack.c.l.b16 %v38
  %v59 = vunpack.c.l.b16 %v39
  %v60 = vunpack.c.l.b16 %v40
  %v61 = vpack.c.b16 %v54, %v53
  %v62 = vpack.c.b16 %v56, %v55
  %v63 = vpack.c.b16 %v58, %v57
  %v64 = vpack.c.b16 %v60, %v59
  %v69 = vunpack.c.l.b16 %v41
  %v70 = vunpack.c.l.b16 %v42
  %v71 = vunpack.c.l.b16 %v43
  %v72 = vunpack.c.l.b16 %v44
  %v73 = vpack.c.b16 %v70, %v69
  %v74 = vpack.c.b16 %v72, %v71
  %vm77 = vcmask 261120
  %v79 = vsel %vm77, %v61, 0
  %v82 = vsel %vm77, %v62, 0
  %v85 = vsel %vm77, %v63, 0
  %v88 = vsel %vm77, %v64, 0
  %90 = vmatprep.subr.bf16.mxu0 0
  %91 = vmatpush1.bf16.msra.mxu0 %v73
  %92 = vmatprep.subr.bf16.mxu0 0
  %93 = vmatpush1.bf16.msra.mxu0 %v74
  %94 = vmatprep.subr.bf16.mxu0 0
  %95 = vmatpush1.bf16.msra.mxu0 0
  %96 = vmatprep.subr.bf16.mxu0 0
  %97 = vmatpush1.bf16.msra.mxu0 0
  %98 = vmatprep.subr.bf16.mxu0 0
  %99 = vmatpush1.bf16.msra.mxu0 0
  %100 = vmatprep.subr.bf16.mxu0 0
  %101 = vmatpush1.bf16.msra.mxu0 0
  %102 = vmatprep.subr.bf16.mxu0 0
  %103 = vmatpush1.bf16.msra.mxu0 0
  %104 = vmatprep.subr.bf16.mxu0 0
  %105 = vmatpush1.bf16.msra.mxu0 0
  %106 = vmatprep.subr.bf16.mxu0 0
  %107 = vmatpush1.bf16.msra.mxu0 0
  %108 = vmatprep.subr.bf16.mxu0 0
  %109 = vmatpush1.bf16.msra.mxu0 0
  %110 = vmatprep.subr.bf16.mxu0 0
  %111 = vmatpush1.bf16.msra.mxu0 0
  %112 = vmatprep.subr.bf16.mxu0 0
  %113 = vmatpush1.bf16.msra.mxu0 0
  %114 = vmatprep.subr.bf16.mxu0 0
  %115 = vmatpush1.bf16.msra.mxu0 0
  %116 = vmatprep.subr.bf16.mxu0 0
  %117 = vmatpush1.bf16.msra.mxu0 0
  %118 = vmatprep.subr.bf16.mxu0 0
  %119 = vmatpush1.bf16.msra.mxu0 0
  %120 = vmatprep.subr.bf16.mxu0 0
  %121 = vmatpush1.bf16.msra.mxu0 0
  %122 = vmatprep.mubr.bf16.mxu0 0
  %123 = vmatmul.mubr.bf16.gmra.mrb[0].mxu0 %v79
  %v124 = vpop.f32.mrb[0].mxu0
  %v125 = vadd.f32 0.0, %v124
  %v126 = vpop.f32.mrb[0].mxu0
  %v127 = vpop.f32.mrb[0].mxu0
  %v128 = vadd.f32 0.0, %v127
  %v129 = vpop.f32.mrb[0].mxu0
  %130 = vmatprep.mubr.bf16.mxu0 0
  %131 = vmatmul.mubr.bf16.gmra.mrb[0].mxu0 %v82
  %v132 = vpop.f32.mrb[0].mxu0
  %v133 = vadd.f32 0.0, %v132
  %v134 = vpop.f32.mrb[0].mxu0
  %v135 = vpop.f32.mrb[0].mxu0
  %v136 = vadd.f32 0.0, %v135
  %v137 = vpop.f32.mrb[0].mxu0
  %138 = vmatprep.mubr.bf16.mxu0 0
  %139 = vmatmul.mubr.bf16.gmra.mrb[0].mxu0 %v85
  %v140 = vpop.f32.mrb[0].mxu0
  %v141 = vadd.f32 0.0, %v140
  %v142 = vpop.f32.mrb[0].mxu0
  %v143 = vpop.f32.mrb[0].mxu0
  %v144 = vadd.f32 0.0, %v143
  %v145 = vpop.f32.mrb[0].mxu0
  %146 = vmatprep.mubr.bf16.mxu0 0
  %147 = vmatmul.mubr.bf16.gmra.mrb[0].mxu0 %v88
  %v148 = vpop.f32.mrb[0].mxu0
  %v149 = vadd.f32 0.0, %v148
  %v150 = vpop.f32.mrb[0].mxu0
  %v151 = vpop.f32.mrb[0].mxu0
  %v152 = vadd.f32 0.0, %v151
  %v153 = vpop.f32.mrb[0].mxu0
  %154 = vdwg.mxu0
  %v155 = vadd.f32 %v25, %v125
  %v156 = vadd.f32 %v26, %v128
  %v157 = vadd.f32 %v27, %v133
  %v158 = vadd.f32 %v28, %v136
  %v159 = vadd.f32 %v29, %v141
  %v160 = vadd.f32 %v30, %v144
  %v161 = vadd.f32 %v31, %v149
  %v162 = vadd.f32 %v32, %v152
  %163 = vst.msk [vmem:[#allocation2] sm:$0xff] %vm77, %v155
  %164 = vst.msk [vmem:[#allocation2 + $0x8] sm:$0xff] %vm77, %v156
  %165 = vst.msk [vmem:[#allocation2 + $0x10] sm:$0xff] %vm77, %v157
  %166 = vst.msk [vmem:[#allocation2 + $0x18] sm:$0xff] %vm77, %v158
  %167 = vst.msk [vmem:[#allocation2 + $0x20] sm:$0xff] %vm77, %v159
  %168 = vst.msk [vmem:[#allocation2 + $0x28] sm:$0xff] %vm77, %v160
  %169 = vst.msk [vmem:[#allocation2 + $0x30] sm:$0xff] %vm77, %v161
  %170 = vst.msk [vmem:[#allocation2 + $0x38] sm:$0xff] %vm77, %v162
  // Predicated region
  $region14: #{rwkv_timemix_forward.5} parent=0 // pred_check
    %p171 = pneg %p12
  $region15: #{rwkv_timemix_forward.5} parent=0 // pred_check_branch
    %173 = sbr.rel (%p171) target = $region17
  $region16: #{rwkv_timemix_forward.5} parent=0 // pred_region
    %v174 = vld [vmem:[#allocation2] sm:$0xff]
    %v175 = vld [vmem:[#allocation2 + $0x8] sm:$0xff]
    %v176 = vld [vmem:[#allocation2 + $0x10] sm:$0xff]
    %v177 = vld [vmem:[#allocation2 + $0x18] sm:$0xff]
    %v178 = vld [vmem:[#allocation2 + $0x20] sm:$0xff]
    %v179 = vld [vmem:[#allocation2 + $0x28] sm:$0xff]
    %v180 = vld [vmem:[#allocation2 + $0x30] sm:$0xff]
    %v181 = vld [vmem:[#allocation2 + $0x38] sm:$0xff]
    %182 = vst.msk [vmem:[%s2] sm:$0xff] %vm77, %v174
    %183 = vst.msk [vmem:[%s2 + $0x8] sm:$0xff] %vm77, %v175
    %184 = vst.msk [vmem:[%s2 + $0x10] sm:$0xff] %vm77, %v176
    %185 = vst.msk [vmem:[%s2 + $0x18] sm:$0xff] %vm77, %v177
    %186 = vst.msk [vmem:[%s2 + $0x20] sm:$0xff] %vm77, %v178
    %187 = vst.msk [vmem:[%s2 + $0x28] sm:$0xff] %vm77, %v179
    %188 = vst.msk [vmem:[%s2 + $0x30] sm:$0xff] %vm77, %v180
    %189 = vst.msk [vmem:[%s2 + $0x38] sm:$0xff] %vm77, %v181
  $region17: #{rwkv_timemix_forward.5} parent=0 // pred_fallthru
    _
  // Predicated region
  $region18: #{rwkv_timemix_forward.5} parent=0 // pred_check
    _
  $region19: #{rwkv_timemix_forward.5} parent=0 // pred_check_branch
    %191 = sbr.rel (0) target = $region21
  $region20: #{rwkv_timemix_forward.5} parent=0 // pred_region
    _
  $region21: #{rwkv_timemix_forward.5} parent=0 // pred_fallthru
    _
  // Predicated region
  $region22: #{rwkv_timemix_forward.5} parent=0 // pred_check
    _
  $region23: #{rwkv_timemix_forward.5} parent=0 // pred_check_branch
    %193 = sbr.rel (0) target = $region25
  $region24: #{rwkv_timemix_forward.5} parent=0 // pred_region
    _
  $region25: #{rwkv_timemix_forward.5} parent=0 // pred_fallthru
    _

// kernel: rwkv_timemix_forward.4
$region0: #{rwkv_timemix_forward.4}
  #allocation0 [shape = 'u32[]', space=smem, size = 0x4, offset = 0x4, fixed_abs, tag = 'smem constant byte address 0x4 - core index']
  #allocation1 [shape = 'u32[144,128]{1,0:T(1,128)}', space=vmem, size = 0x12000, scoped, tag = 'internal scratch']
  #allocation2 [shape = 'f32[8,32]{1,0:T(8,128)}', space=vmem, size = 0x1000, scoped, tag = 'scratch operand']
  #allocation3 [shape = 'f32[8,32]{1,0:T(8,128)}', space=vmem, size = 0x1000, scoped, tag = 'scratch operand']
  #allocation4 [shape = 'f32[8,32]{1,0:T(8,128)}', space=vmem, size = 0x1000, scoped, tag = 'scratch operand']
  %s0 = inlined_call_operand.vmem [shape: f32[1,32], index: 0, kind: input, shape index: {}]
  %s1 = inlined_call_operand.vmem [shape: f32[1,32], index: 1, kind: input, shape index: {}]
  %s2 = inlined_call_operand.vmem [shape: f32[8,1,8,32], index: 2, kind: input, shape index: {}]
  %s3 = inlined_call_operand.vmem [shape: bf16[8,1,8,32], index: 3, kind: input, shape index: {}]
  %s4 = inlined_call_operand.vmem [shape: bf16[8,1,8,32], index: 4, kind: input, shape index: {}]
  %s5 = inlined_call_operand.vmem [shape: bf16[8,1,8,32], index: 5, kind: output, shape index: {}]
  %s6 = sld [smem:[#allocation0]]
  $region34: #{rwkv_timemix_forward.4} parent=0
    _
  %s8 = ssub.s32 1, %s6
  %s9 = scalar_select 0, %s8, %s6
  // Predicated region
  $region2: #{rwkv_timemix_forward.4} parent=0 // pred_check
    _
  $region3: #{rwkv_timemix_forward.4} parent=0 // pred_check_branch
    %11 = sbr.rel (0) target = $region5
  $region4: #{rwkv_timemix_forward.4} parent=0 // pred_region
    _
  $region5: #{rwkv_timemix_forward.4} parent=0 // pred_fallthru
    _
  // Predicated region
  $region6: #{rwkv_timemix_forward.4} parent=0 // pred_check
    _
  $region7: #{rwkv_timemix_forward.4} parent=0 // pred_check_branch
    %13 = sbr.rel (0) target = $region9
  $region8: #{rwkv_timemix_forward.4} parent=0 // pred_region
    _
  $region9: #{rwkv_timemix_forward.4} parent=0 // pred_fallthru
    _
  // Predicated region
  $region10: #{rwkv_timemix_forward.4} parent=0 // pred_check
    _
  $region11: #{rwkv_timemix_forward.4} parent=0 // pred_check_branch
    %15 = sbr.rel (0) target = $region13
  $region12: #{rwkv_timemix_forward.4} parent=0 // pred_region
    _
  $region13: #{rwkv_timemix_forward.4} parent=0 // pred_fallthru
    _
  // Predicated region
  $region14: #{rwkv_timemix_forward.4} parent=0 // pred_check
    _
  $region15: #{rwkv_timemix_forward.4} parent=0 // pred_check_branch
    %17 = sbr.rel (0) target = $region17
  $region16: #{rwkv_timemix_forward.4} parent=0 // pred_region
    _
  $region17: #{rwkv_timemix_forward.4} parent=0 // pred_fallthru
    _
  // Predicated region
  $region18: #{rwkv_timemix_forward.4} parent=0 // pred_check
    _
  $region19: #{rwkv_timemix_forward.4} parent=0 // pred_check_branch
    %19 = sbr.rel (0) target = $region21
  $region20: #{rwkv_timemix_forward.4} parent=0 // pred_region
    _
  $region21: #{rwkv_timemix_forward.4} parent=0 // pred_fallthru
    _
  %p20 = scmp.eq.s32.totalorder 0, 0
  // Predicated region
  $region22: #{rwkv_timemix_forward.4} parent=0 // pred_check
    %p21 = pneg %p20
  $region23: #{rwkv_timemix_forward.4} parent=0 // pred_check_branch
    %23 = sbr.rel (%p21) target = $region25
  $region24: #{rwkv_timemix_forward.4} parent=0 // pred_region
    %vm24 = vcmask 261120
    %25 = vst.msk [vmem:[#allocation2] sm:$0xff] %vm24, 0.0
    %26 = vst.msk [vmem:[#allocation3] sm:$0xff] %vm24, 0.0
    %27 = vst.msk [vmem:[#allocation4] sm:$0xff] %vm24, -1e+38
  $region25: #{rwkv_timemix_forward.4} parent=0 // pred_fallthru
    _
  %v28 = vld [vmem:[%s0] sm:$0x1]
  %v30 = vlaneseq
  %v31 = vshrl.u32 %v30, 7
  %v32 = vsub.s32 0, %v31
  %v33 = vrot.slane %v28, %v32
  %v35 = vld [vmem:[%s1] sm:$0x1]
  %v37 = vlaneseq
  %v38 = vshrl.u32 %v37, 7
  %v39 = vsub.s32 0, %v38
  %v40 = vrot.slane %v35, %v39
  %v42 = vld [vmem:[#allocation2] sm:$0xff]
  %v43 = vld [vmem:[#allocation3] sm:$0xff]
  %v44 = vld [vmem:[#allocation4] sm:$0xff]
  %v45 = vld [vmem:[%s2] sm:$0xff]
  %v46 = vld [vmem:[%s3] sm:$0xf]
  %v47 = vunpack.c.l.bf16 %v46
  %v48 = vld [vmem:[%s4] sm:$0xf]
  %v49 = vadd.f32 %v40, %v45
  %v50 = vsub.f32 %v44, %v49
  %v51 = vand.u32 2147483647, %v50
  %v52 = vsub.f32 0.0, %v51
  %v53 = vmul.f32 %v52, 1.442695
  %v54 = vpow.pop %v53
  %vm55 = vcmp.ge.f32.partialorder %v50, 0.0
  %v56 = vsel %vm55, 1.0, %v54
  %v57 = vsel %vm55, %v54, 1.0
  %v58 = vmul.f32 %v56, %v42
  %v59 = vmul.f32 %v57, %v47
  %v60 = vadd.f32 %v58, %v59
  %v61 = vmul.f32 %v56, %v43
  %v62 = vadd.f32 %v61, %v57
  %v63 = vrcp.pop %v62
  %v64 = vmul.f32 %v60, %v63
  %v65 = vunpack.c.l.bf16 %v48
  %v66 = vmul.f32 %v65, %v64
  %v67 = vpack.c.bf16 %v66, %v66
  %vm68 = vcmask 257024
  %69 = vst.msk [vmem:[%s5] sm:$0xf] %vm68, %v67
  %v70 = vadd.f32 %v33, %v44
  %v71 = vsub.f32 %v70, %v45
  %v72 = vmax.f32 %v70, %v45
  %v73 = vand.u32 2147483647, %v71
  %v74 = vsub.f32 0.0, %v73
  %v75 = vmul.f32 %v74, 1.442695
  %v76 = vpow.pop %v75
  %vm77 = vcmp.ge.f32.partialorder %v71, 0.0
  %v78 = vsel %vm77, 1.0, %v76
  %v79 = vsel %vm77, %v76, 1.0
  %v80 = vmul.f32 %v78, %v42
  %v81 = vmul.f32 %v79, %v47
  %v82 = vadd.f32 %v80, %v81
  %v83 = vmul.f32 %v78, %v43
  %v84 = vadd.f32 %v83, %v79
  %s85 = scalar_lea.vmem %s2, 8
  %v86 = vld [vmem:[%s85] sm:$0xff]
  %s87 = scalar_lea.vmem %s3, 4
  %v88 = vld [vmem:[%s87] sm:$0xf]
  %v89 = vunpack.c.l.bf16 %v88
  %s90 = scalar_lea.vmem %s4, 4
  %v91 = vld [vmem:[%s90] sm:$0xf]
  %v92 = vadd.f32 %v40, %v86
  %v93 = vsub.f32 %v72, %v92
  %v94 = vand.u32 2147483647, %v93
  %v95 = vsub.f32 0.0, %v94
  %v96 = vmul.f32 %v95, 1.442695
  %v97 = vpow.pop %v96
  %vm98 = vcmp.ge.f32.partialorder %v93, 0.0
  %v99 = vsel %vm98, 1.0, %v97
  %v100 = vsel %vm98, %v97, 1.0
  %v101 = vmul.f32 %v99, %v82
  %v102 = vmul.f32 %v100, %v89
  %v103 = vadd.f32 %v101, %v102
  %v104 = vmul.f32 %v99, %v84
  %v105 = vadd.f32 %v104, %v100
  %v106 = vrcp.pop %v105
  %v107 = vmul.f32 %v103, %v106
  %v108 = vunpack.c.l.bf16 %v91
  %v109 = vmul.f32 %v108, %v107
  %v110 = vpack.c.bf16 %v109, %v109
  %s111 = scalar_lea.vmem %s5, 4
  %112 = vst.msk [vmem:[%s111] sm:$0xf] %vm68, %v110
  %v113 = vadd.f32 %v33, %v72
  %v114 = vsub.f32 %v113, %v86
  %v115 = vmax.f32 %v113, %v86
  %v116 = vand.u32 2147483647, %v114
  %v117 = vsub.f32 0.0, %v116
  %v118 = vmul.f32 %v117, 1.442695
  %v119 = vpow.pop %v118
  %vm120 = vcmp.ge.f32.partialorder %v114, 0.0
  %v121 = vsel %vm120, 1.0, %v119
  %v122 = vsel %vm120, %v119, 1.0
  %v123 = vmul.f32 %v121, %v82
  %v124 = vmul.f32 %v122, %v89
  %v125 = vadd.f32 %v123, %v124
  %v126 = vmul.f32 %v121, %v84
  %v127 = vadd.f32 %v126, %v122
  %s128 = scalar_lea.vmem %s2, 16
  %v129 = vld [vmem:[%s128] sm:$0xff]
  %s130 = scalar_lea.vmem %s3, 8
  %v131 = vld [vmem:[%s130] sm:$0xf]
  %v132 = vunpack.c.l.bf16 %v131
  %s133 = scalar_lea.vmem %s4, 8
  %v134 = vld [vmem:[%s133] sm:$0xf]
  %v135 = vadd.f32 %v40, %v129
  %v136 = vsub.f32 %v115, %v135
  %v137 = vand.u32 2147483647, %v136
  %v138 = vsub.f32 0.0, %v137
  %v139 = vmul.f32 %v138, 1.442695
  %v140 = vpow.pop %v139
  %vm141 = vcmp.ge.f32.partialorder %v136, 0.0
  %v142 = vsel %vm141, 1.0, %v140
  %v143 = vsel %vm141, %v140, 1.0
  %v144 = vmul.f32 %v142, %v125
  %v145 = vmul.f32 %v143, %v132
  %v146 = vadd.f32 %v144, %v145
  %v147 = vmul.f32 %v142, %v127
  %v148 = vadd.f32 %v147, %v143
  %v149 = vrcp.pop %v148
  %v150 = vmul.f32 %v146, %v149
  %v151 = vunpack.c.l.bf16 %v134
  %v152 = vmul.f32 %v151, %v150
  %v153 = vpack.c.bf16 %v152, %v152
  %s154 = scalar_lea.vmem %s5, 8
  %155 = vst.msk [vmem:[%s154] sm:$0xf] %vm68, %v153
  %v156 = vadd.f32 %v33, %v115
  %v157 = vsub.f32 %v156, %v129
  %v158 = vmax.f32 %v156, %v129
  %v159 = vand.u32 2147483647, %v157
  %v160 = vsub.f32 0.0, %v159
  %v161 = vmul.f32 %v160, 1.442695
  %v162 = vpow.pop %v161
  %vm163 = vcmp.ge.f32.partialorder %v157, 0.0
  %v164 = vsel %vm163, 1.0, %v162
  %v165 = vsel %vm163, %v162, 1.0
  %v166 = vmul.f32 %v164, %v125
  %v167 = vmul.f32 %v165, %v132
  %v168 = vadd.f32 %v166, %v167
  %v169 = vmul.f32 %v164, %v127
  %v170 = vadd.f32 %v169, %v165
  %s171 = scalar_lea.vmem %s2, 24
  %v172 = vld [vmem:[%s171] sm:$0xff]
  %s173 = scalar_lea.vmem %s3, 12
  %v174 = vld [vmem:[%s173] sm:$0xf]
  %v175 = vunpack.c.l.bf16 %v174
  %s176 = scalar_lea.vmem %s4, 12
  %v177 = vld [vmem:[%s176] sm:$0xf]
  %v178 = vadd.f32 %v40, %v172
  %v179 = vsub.f32 %v158, %v178
  %v180 = vand.u32 2147483647, %v179
  %v181 = vsub.f32 0.0, %v180
  %v182 = vmul.f32 %v181, 1.442695
  %v183 = vpow.pop %v182
  %vm184 = vcmp.ge.f32.partialorder %v179, 0.0
  %v185 = vsel %vm184, 1.0, %v183
  %v186 = vsel %vm184, %v183, 1.0
  %v187 = vmul.f32 %v185, %v168
  %v188 = vmul.f32 %v186, %v175
  %v189 = vadd.f32 %v187, %v188
  %v190 = vmul.f32 %v185, %v170
  %v191 = vadd.f32 %v190, %v186
  %v192 = vrcp.pop %v191
  %v193 = vmul.f32 %v189, %v192
  %v194 = vunpack.c.l.bf16 %v177
  %v195 = vmul.f32 %v194, %v193
  %v196 = vpack.c.bf16 %v195, %v195
  %s197 = scalar_lea.vmem %s5, 12
  %198 = vst.msk [vmem:[%s197] sm:$0xf] %vm68, %v196
  %v199 = vadd.f32 %v33, %v158
  %v200 = vsub.f32 %v199, %v172
  %v201 = vmax.f32 %v199, %v172
  %v202 = vand.u32 2147483647, %v200
  %v203 = vsub.f32 0.0, %v202
  %v204 = vmul.f32 %v203, 1.442695
  %v205 = vpow.pop %v204
  %vm206 = vcmp.ge.f32.partialorder %v200, 0.0
  %v207 = vsel %vm206, 1.0, %v205
  %v208 = vsel %vm206, %v205, 1.0
  %v209 = vmul.f32 %v207, %v168
  %v210 = vmul.f32 %v208, %v175
  %v211 = vadd.f32 %v209, %v210
  %v212 = vmul.f32 %v207, %v170
  %v213 = vadd.f32 %v212, %v208
  %s214 = scalar_lea.vmem %s2, 32
  %v215 = vld [vmem:[%s214] sm:$0xff]
  %s216 = scalar_lea.vmem %s3, 16
  %v217 = vld [vmem:[%s216] sm:$0xf]
  %v218 = vunpack.c.l.bf16 %v217
  %s219 = scalar_lea.vmem %s4, 16
  %v220 = vld [vmem:[%s219] sm:$0xf]
  %v221 = vadd.f32 %v40, %v215
  %v222 = vsub.f32 %v201, %v221
  %v223 = vand.u32 2147483647, %v222
  %v224 = vsub.f32 0.0, %v223
  %v225 = vmul.f32 %v224, 1.442695
  %v226 = vpow.pop %v225
  %vm227 = vcmp.ge.f32.partialorder %v222, 0.0
  %v228 = vsel %vm227, 1.0, %v226
  %v229 = vsel %vm227, %v226, 1.0
  %v230 = vmul.f32 %v228, %v211
  %v231 = vmul.f32 %v229, %v218
  %v232 = vadd.f32 %v230, %v231
  %v233 = vmul.f32 %v228, %v213
  %v234 = vadd.f32 %v233, %v229
  %v235 = vrcp.pop %v234
  %v236 = vmul.f32 %v232, %v235
  %v237 = vunpack.c.l.bf16 %v220
  %v238 = vmul.f32 %v237, %v236
  %v239 = vpack.c.bf16 %v238, %v238
  %s240 = scalar_lea.vmem %s5, 16
  %241 = vst.msk [vmem:[%s240] sm:$0xf] %vm68, %v239
  %v242 = vadd.f32 %v33, %v201
  %v243 = vsub.f32 %v242, %v215
  %v244 = vmax.f32 %v242, %v215
  %v245 = vand.u32 2147483647, %v243
  %v246 = vsub.f32 0.0, %v245
  %v247 = vmul.f32 %v246, 1.442695
  %v248 = vpow.pop %v247
  %vm249 = vcmp.ge.f32.partialorder %v243, 0.0
  %v250 = vsel %vm249, 1.0, %v248
  %v251 = vsel %vm249, %v248, 1.0
  %v252 = vmul.f32 %v250, %v211
  %v253 = vmul.f32 %v251, %v218
  %v254 = vadd.f32 %v252, %v253
  %v255 = vmul.f32 %v250, %v213
  %v256 = vadd.f32 %v255, %v251
  %s257 = scalar_lea.vmem %s2, 40
  %v258 = vld [vmem:[%s257] sm:$0xff]
  %s259 = scalar_lea.vmem %s3, 20
  %v260 = vld [vmem:[%s259] sm:$0xf]
  %v261 = vunpack.c.l.bf16 %v260
  %s262 = scalar_lea.vmem %s4, 20
  %v263 = vld [vmem:[%s262] sm:$0xf]
  %v264 = vadd.f32 %v40, %v258
  %v265 = vsub.f32 %v244, %v264
  %v266 = vand.u32 2147483647, %v265
  %v267 = vsub.f32 0.0, %v266
  %v268 = vmul.f32 %v267, 1.442695
  %v269 = vpow.pop %v268
  %vm270 = vcmp.ge.f32.partialorder %v265, 0.0
  %v271 = vsel %vm270, 1.0, %v269
  %v272 = vsel %vm270, %v269, 1.0
  %v273 = vmul.f32 %v271, %v254
  %v274 = vmul.f32 %v272, %v261
  %v275 = vadd.f32 %v273, %v274
  %v276 = vmul.f32 %v271, %v256
  %v277 = vadd.f32 %v276, %v272
  %v278 = vrcp.pop %v277
  %v279 = vmul.f32 %v275, %v278
  %v280 = vunpack.c.l.bf16 %v263
  %v281 = vmul.f32 %v280, %v279
  %v282 = vpack.c.bf16 %v281, %v281
  %s283 = scalar_lea.vmem %s5, 20
  %284 = vst.msk [vmem:[%s283] sm:$0xf] %vm68, %v282
  %v285 = vadd.f32 %v33, %v244
  %v286 = vsub.f32 %v285, %v258
  %v287 = vmax.f32 %v285, %v258
  %v288 = vand.u32 2147483647, %v286
  %v289 = vsub.f32 0.0, %v288
  %v290 = vmul.f32 %v289, 1.442695
  %v291 = vpow.pop %v290
  %vm292 = vcmp.ge.f32.partialorder %v286, 0.0
  %v293 = vsel %vm292, 1.0, %v291
  %v294 = vsel %vm292, %v291, 1.0
  %v295 = vmul.f32 %v293, %v254
  %v296 = vmul.f32 %v294, %v261
  %v297 = vadd.f32 %v295, %v296
  %v298 = vmul.f32 %v293, %v256
  %v299 = vadd.f32 %v298, %v294
  %s300 = scalar_lea.vmem %s2, 48
  %v301 = vld [vmem:[%s300] sm:$0xff]
  %s302 = scalar_lea.vmem %s3, 24
  %v303 = vld [vmem:[%s302] sm:$0xf]
  %v304 = vunpack.c.l.bf16 %v303
  %s305 = scalar_lea.vmem %s4, 24
  %v306 = vld [vmem:[%s305] sm:$0xf]
  %v307 = vadd.f32 %v40, %v301
  %v308 = vsub.f32 %v287, %v307
  %v309 = vand.u32 2147483647, %v308
  %v310 = vsub.f32 0.0, %v309
  %v311 = vmul.f32 %v310, 1.442695
  %v312 = vpow.pop %v311
  %vm313 = vcmp.ge.f32.partialorder %v308, 0.0
  %v314 = vsel %vm313, 1.0, %v312
  %v315 = vsel %vm313, %v312, 1.0
  %v316 = vmul.f32 %v314, %v297
  %v317 = vmul.f32 %v315, %v304
  %v318 = vadd.f32 %v316, %v317
  %v319 = vmul.f32 %v314, %v299
  %v320 = vadd.f32 %v319, %v315
  %v321 = vrcp.pop %v320
  %v322 = vmul.f32 %v318, %v321
  %v323 = vunpack.c.l.bf16 %v306
  %v324 = vmul.f32 %v323, %v322
  %v325 = vpack.c.bf16 %v324, %v324
  %s326 = scalar_lea.vmem %s5, 24
  %327 = vst.msk [vmem:[%s326] sm:$0xf] %vm68, %v325
  %v328 = vadd.f32 %v33, %v287
  %v329 = vsub.f32 %v328, %v301
  %v330 = vmax.f32 %v328, %v301
  %v331 = vand.u32 2147483647, %v329
  %v332 = vsub.f32 0.0, %v331
  %v333 = vmul.f32 %v332, 1.442695
  %v334 = vpow.pop %v333
  %vm335 = vcmp.ge.f32.partialorder %v329, 0.0
  %v336 = vsel %vm335, 1.0, %v334
  %v337 = vsel %vm335, %v334, 1.0
  %v338 = vmul.f32 %v336, %v297
  %v339 = vmul.f32 %v337, %v304
  %v340 = vadd.f32 %v338, %v339
  %v341 = vmul.f32 %v336, %v299
  %v342 = vadd.f32 %v341, %v337
  %s343 = scalar_lea.vmem %s2, 56
  %v344 = vld [vmem:[%s343] sm:$0xff]
  %s345 = scalar_lea.vmem %s3, 28
  %v346 = vld [vmem:[%s345] sm:$0xf]
  %v347 = vunpack.c.l.bf16 %v346
  %s348 = scalar_lea.vmem %s4, 28
  %v349 = vld [vmem:[%s348] sm:$0xf]
  %v350 = vadd.f32 %v40, %v344
  %v351 = vsub.f32 %v330, %v350
  %v352 = vand.u32 2147483647, %v351
  %v353 = vsub.f32 0.0, %v352
  %v354 = vmul.f32 %v353, 1.442695
  %v355 = vpow.pop %v354
  %vm356 = vcmp.ge.f32.partialorder %v351, 0.0
  %v357 = vsel %vm356, 1.0, %v355
  %v358 = vsel %vm356, %v355, 1.0
  %v359 = vmul.f32 %v357, %v340
  %v360 = vmul.f32 %v358, %v347
  %v361 = vadd.f32 %v359, %v360
  %v362 = vmul.f32 %v357, %v342
  %v363 = vadd.f32 %v362, %v358
  %v364 = vrcp.pop %v363
  %v365 = vmul.f32 %v361, %v364
  %v366 = vunpack.c.l.bf16 %v349
  %v367 = vmul.f32 %v366, %v365
  %v368 = vpack.c.bf16 %v367, %v367
  %s369 = scalar_lea.vmem %s5, 28
  %370 = vst.msk [vmem:[%s369] sm:$0xf] %vm68, %v368
  %v371 = vadd.f32 %v33, %v330
  %v372 = vsub.f32 %v371, %v344
  %v373 = vmax.f32 %v371, %v344
  %v374 = vand.u32 2147483647, %v372
  %v375 = vsub.f32 0.0, %v374
  %v376 = vmul.f32 %v375, 1.442695
  %v377 = vpow.pop %v376
  %vm378 = vcmp.ge.f32.partialorder %v372, 0.0
  %v379 = vsel %vm378, 1.0, %v377
  %v380 = vsel %vm378, %v377, 1.0
  %v381 = vmul.f32 %v379, %v340
  %v382 = vmul.f32 %v380, %v347
  %v383 = vadd.f32 %v381, %v382
  %v384 = vmul.f32 %v379, %v342
  %v385 = vadd.f32 %v384, %v380
  %vm386 = vcmask 261120
  %387 = vst.msk [vmem:[#allocation2] sm:$0xff] %vm386, %v383
  %388 = vst.msk [vmem:[#allocation3] sm:$0xff] %vm386, %v385
  %389 = vst.msk [vmem:[#allocation4] sm:$0xff] %vm386, %v373
  // Predicated region
  $region26: #{rwkv_timemix_forward.4} parent=0 // pred_check
    _
  $region27: #{rwkv_timemix_forward.4} parent=0 // pred_check_branch
    %391 = sbr.rel (0) target = $region29
  $region28: #{rwkv_timemix_forward.4} parent=0 // pred_region
    _
  $region29: #{rwkv_timemix_forward.4} parent=0 // pred_fallthru
    _
  // Predicated region
  $region30: #{rwkv_timemix_forward.4} parent=0 // pred_check
    _
  $region31: #{rwkv_timemix_forward.4} parent=0 // pred_check_branch
    %393 = sbr.rel (0) target = $region33
  $region32: #{rwkv_timemix_forward.4} parent=0 // pred_region
    _
  $region33: #{rwkv_timemix_forward.4} parent=0 // pred_fallthru
    _

// kernel: rwkv_timemix_forward.3
$region0: #{rwkv_timemix_forward.3}
  #allocation0 [shape = 'u32[]', space=smem, size = 0x4, offset = 0x4, fixed_abs, tag = 'smem constant byte address 0x4 - core index']
  #allocation1 [shape = 'u32[144,128]{1,0:T(1,128)}', space=vmem, size = 0x12000, scoped, tag = 'internal scratch']
  #allocation2 [shape = 'f32[64,32]{1,0:T(8,128)}', space=vmem, size = 0x8000, scoped, tag = 'scratch operand']
  #allocation3 [shape = 'f32[64,32]{1,0:T(8,128)}', space=vmem, size = 0x8000, scoped, tag = 'scratch operand']
  #allocation4 [shape = 'f32[64,32]{1,0:T(8,128)}', space=vmem, size = 0x8000, scoped, tag = 'scratch operand']
  %s0 = inlined_call_operand.vmem [shape: bf16[64,32], index: 0, kind: input, shape index: {}]
  %s1 = inlined_call_operand.vmem [shape: bf16[64,32], index: 1, kind: input, shape index: {}]
  %s2 = inlined_call_operand.vmem [shape: bf16[1,32], index: 2, kind: input, shape index: {}]
  %s3 = inlined_call_operand.vmem [shape: bf16[1,32], index: 3, kind: input, shape index: {}]
  %s4 = inlined_call_operand.vmem [shape: bf16[1,32], index: 4, kind: input, shape index: {}]
  %s5 = inlined_call_operand.vmem [shape: bf16[32,32], index: 5, kind: input, shape index: {}]
  %s6 = inlined_call_operand.vmem [shape: bf16[32,32], index: 6, kind: input, shape index: {}]
  %s7 = inlined_call_operand.vmem [shape: bf16[32,32], index: 7, kind: input, shape index: {}]
  %s8 = inlined_call_operand.vmem [shape: f32[64,32], index: 8, kind: output, shape index: {0}]
  %s9 = inlined_call_operand.vmem [shape: bf16[64,32], index: 9, kind: output, shape index: {1}]
  %s10 = inlined_call_operand.vmem [shape: bf16[64,32], index: 10, kind: output, shape index: {2}]
  %11 = xla_tuple %s8, %s9, %s10
  %s12 = sld [smem:[#allocation0]]
  $region66: #{rwkv_timemix_forward.3} parent=0
    _
  %s14 = ssub.s32 1, %s12
  %s15 = scalar_select 0, %s14, %s12
  // Predicated region
  $region2: #{rwkv_timemix_forward.3} parent=0 // pred_check
    _
  $region3: #{rwkv_timemix_forward.3} parent=0 // pred_check_branch
    %17 = sbr.rel (0) target = $region5
  $region4: #{rwkv_timemix_forward.3} parent=0 // pred_region
    _
  $region5: #{rwkv_timemix_forward.3} parent=0 // pred_fallthru
    _
  // Predicated region
  $region6: #{rwkv_timemix_forward.3} parent=0 // pred_check
    _
  $region7: #{rwkv_timemix_forward.3} parent=0 // pred_check_branch
    %19 = sbr.rel (0) target = $region9
  $region8: #{rwkv_timemix_forward.3} parent=0 // pred_region
    _
  $region9: #{rwkv_timemix_forward.3} parent=0 // pred_fallthru
    _
  // Predicated region
  $region10: #{rwkv_timemix_forward.3} parent=0 // pred_check
    _
  $region11: #{rwkv_timemix_forward.3} parent=0 // pred_check_branch
    %21 = sbr.rel (0) target = $region13
  $region12: #{rwkv_timemix_forward.3} parent=0 // pred_region
    _
  $region13: #{rwkv_timemix_forward.3} parent=0 // pred_fallthru
    _
  // Predicated region
  $region14: #{rwkv_timemix_forward.3} parent=0 // pred_check
    _
  $region15: #{rwkv_timemix_forward.3} parent=0 // pred_check_branch
    %23 = sbr.rel (0) target = $region17
  $region16: #{rwkv_timemix_forward.3} parent=0 // pred_region
    _
  $region17: #{rwkv_timemix_forward.3} parent=0 // pred_fallthru
    _
  // Predicated region
  $region18: #{rwkv_timemix_forward.3} parent=0 // pred_check
    _
  $region19: #{rwkv_timemix_forward.3} parent=0 // pred_check_branch
    %25 = sbr.rel (0) target = $region21
  $region20: #{rwkv_timemix_forward.3} parent=0 // pred_region
    _
  $region21: #{rwkv_timemix_forward.3} parent=0 // pred_fallthru
    _
  // Predicated region
  $region22: #{rwkv_timemix_forward.3} parent=0 // pred_check
    _
  $region23: #{rwkv_timemix_forward.3} parent=0 // pred_check_branch
    %27 = sbr.rel (0) target = $region25
  $region24: #{rwkv_timemix_forward.3} parent=0 // pred_region
    _
  $region25: #{rwkv_timemix_forward.3} parent=0 // pred_fallthru
    _
  // Predicated region
  $region26: #{rwkv_timemix_forward.3} parent=0 // pred_check
    _
  $region27: #{rwkv_timemix_forward.3} parent=0 // pred_check_branch
    %29 = sbr.rel (0) target = $region29
  $region28: #{rwkv_timemix_forward.3} parent=0 // pred_region
    _
  $region29: #{rwkv_timemix_forward.3} parent=0 // pred_fallthru
    _
  // Predicated region
  $region30: #{rwkv_timemix_forward.3} parent=0 // pred_check
    _
  $region31: #{rwkv_timemix_forward.3} parent=0 // pred_check_branch
    %31 = sbr.rel (0) target = $region33
  $region32: #{rwkv_timemix_forward.3} parent=0 // pred_region
    _
  $region33: #{rwkv_timemix_forward.3} parent=0 // pred_fallthru
    _
  %p33 = scmp.eq.s32.totalorder 0, 0
  // Predicated region
  $region34: #{rwkv_timemix_forward.3} parent=0 // pred_check
    %p34 = pneg %p33
  $region35: #{rwkv_timemix_forward.3} parent=0 // pred_check_branch
    %36 = sbr.rel (%p34) target = $region37
  $region36: #{rwkv_timemix_forward.3} parent=0 // pred_region
    %vm37 = vcmask 261120
    %38 = vst.msk [vmem:[#allocation2] sm:$0xff] %vm37, 0.0
    %39 = vst.msk [vmem:[#allocation2 + $0x8] sm:$0xff] %vm37, 0.0
    %40 = vst.msk [vmem:[#allocation2 + $0x10] sm:$0xff] %vm37, 0.0
    %41 = vst.msk [vmem:[#allocation2 + $0x18] sm:$0xff] %vm37, 0.0
    %42 = vst.msk [vmem:[#allocation2 + $0x20] sm:$0xff] %vm37, 0.0
    %43 = vst.msk [vmem:[#allocation2 + $0x28] sm:$0xff] %vm37, 0.0
    %44 = vst.msk [vmem:[#allocation2 + $0x30] sm:$0xff] %vm37, 0.0
    %45 = vst.msk [vmem:[#allocation2 + $0x38] sm:$0xff] %vm37, 0.0
    %46 = vst.msk [vmem:[#allocation3] sm:$0xff] %vm37, 0.0
    %47 = vst.msk [vmem:[#allocation3 + $0x8] sm:$0xff] %vm37, 0.0
    %48 = vst.msk [vmem:[#allocation3 + $0x10] sm:$0xff] %vm37, 0.0
    %49 = vst.msk [vmem:[#allocation3 + $0x18] sm:$0xff] %vm37, 0.0
    %50 = vst.msk [vmem:[#allocation3 + $0x20] sm:$0xff] %vm37, 0.0
    %51 = vst.msk [vmem:[#allocation3 + $0x28] sm:$0xff] %vm37, 0.0
    %52 = vst.msk [vmem:[#allocation3 + $0x30] sm:$0xff] %vm37, 0.0
    %53 = vst.msk [vmem:[#allocation3 + $0x38] sm:$0xff] %vm37, 0.0
    %54 = vst.msk [vmem:[#allocation4] sm:$0xff] %vm37, 0.0
    %55 = vst.msk [vmem:[#allocation4 + $0x8] sm:$0xff] %vm37, 0.0
    %56 = vst.msk [vmem:[#allocation4 + $0x10] sm:$0xff] %vm37, 0.0
    %57 = vst.msk [vmem:[#allocation4 + $0x18] sm:$0xff] %vm37, 0.0
    %58 = vst.msk [vmem:[#allocation4 + $0x20] sm:$0xff] %vm37, 0.0
    %59 = vst.msk [vmem:[#allocation4 + $0x28] sm:$0xff] %vm37, 0.0
    %60 = vst.msk [vmem:[#allocation4 + $0x30] sm:$0xff] %vm37, 0.0
    %61 = vst.msk [vmem:[#allocation4 + $0x38] sm:$0xff] %vm37, 0.0
  $region37: #{rwkv_timemix_forward.3} parent=0 // pred_fallthru
    _
  %v62 = vld [vmem:[%s0] sm:$0xf]
  %v63 = vld [vmem:[%s0 + $0x4] sm:$0xf]
  %v64 = vld [vmem:[%s0 + $0x8] sm:$0xf]
  %v65 = vld [vmem:[%s0 + $0xc] sm:$0xf]
  %v66 = vld [vmem:[%s0 + $0x10] sm:$0xf]
  %v67 = vld [vmem:[%s0 + $0x14] sm:$0xf]
  %v68 = vld [vmem:[%s0 + $0x18] sm:$0xf]
  %v69 = vld [vmem:[%s0 + $0x1c] sm:$0xf]
  %v70 = vld [vmem:[%s1] sm:$0xf]
  %v71 = vld [vmem:[%s1 + $0x4] sm:$0xf]
  %v72 = vld [vmem:[%s1 + $0x8] sm:$0xf]
  %v73 = vld [vmem:[%s1 + $0xc] sm:$0xf]
  %v74 = vld [vmem:[%s1 + $0x10] sm:$0xf]
  %v75 = vld [vmem:[%s1 + $0x14] sm:$0xf]
  %v76 = vld [vmem:[%s1 + $0x18] sm:$0xf]
  %v77 = vld [vmem:[%s1 + $0x1c] sm:$0xf]
  %v78 = vsub.bf16 %v62, %v70
  %v79 = vsub.bf16 %v63, %v71
  %v80 = vsub.bf16 %v64, %v72
  %v81 = vsub.bf16 %v65, %v73
  %v82 = vsub.bf16 %v66, %v74
  %v83 = vsub.bf16 %v67, %v75
  %v84 = vsub.bf16 %v68, %v76
  %v85 = vsub.bf16 %v69, %v77
  %v86 = vld [vmem:[%s2] sm:$0x1]
  %v88 = vpack.i.b16 %v86, %v86
  %v90 = vlaneseq
  %v91 = vshrl.u32 %v90, 7
  %v92 = vsub.s32 0, %v91
  %v93 = vrot.slane %v88, %v92
  %v95 = vunpack.c.l.b16 %v93
  %v96 = vpack.c.b16 %v95, %v95
  %v98 = vmul.bf16 %v78, %v96
  %v99 = vmul.bf16 %v79, %v96
  %v100 = vmul.bf16 %v80, %v96
  %v101 = vmul.bf16 %v81, %v96
  %v102 = vmul.bf16 %v82, %v96
  %v103 = vmul.bf16 %v83, %v96
  %v104 = vmul.bf16 %v84, %v96
  %v105 = vmul.bf16 %v85, %v96
  %v106 = vadd.bf16 %v70, %v98
  %v107 = vadd.bf16 %v71, %v99
  %v108 = vadd.bf16 %v72, %v100
  %v109 = vadd.bf16 %v73, %v101
  %v110 = vadd.bf16 %v74, %v102
  %v111 = vadd.bf16 %v75, %v103
  %v112 = vadd.bf16 %v76, %v104
  %v113 = vadd.bf16 %v77, %v105
  %v114 = vld [vmem:[%s3] sm:$0x1]
  %v116 = vpack.i.b16 %v114, %v114
  %v118 = vlaneseq
  %v119 = vshrl.u32 %v118, 7
  %v120 = vsub.s32 0, %v119
  %v121 = vrot.slane %v116, %v120
  %v123 = vunpack.c.l.b16 %v121
  %v124 = vpack.c.b16 %v123, %v123
  %v126 = vmul.bf16 %v78, %v124
  %v127 = vmul.bf16 %v79, %v124
  %v128 = vmul.bf16 %v80, %v124
  %v129 = vmul.bf16 %v81, %v124
  %v130 = vmul.bf16 %v82, %v124
  %v131 = vmul.bf16 %v83, %v124
  %v132 = vmul.bf16 %v84, %v124
  %v133 = vmul.bf16 %v85, %v124
  %v134 = vadd.bf16 %v70, %v126
  %v135 = vadd.bf16 %v71, %v127
  %v136 = vadd.bf16 %v72, %v128
  %v137 = vadd.bf16 %v73, %v129
  %v138 = vadd.bf16 %v74, %v130
  %v139 = vadd.bf16 %v75, %v131
  %v140 = vadd.bf16 %v76, %v132
  %v141 = vadd.bf16 %v77, %v133
  %v142 = vld [vmem:[%s4] sm:$0x1]
  %v144 = vpack.i.b16 %v142, %v142
  %v146 = vlaneseq
  %v147 = vshrl.u32 %v146, 7
  %v148 = vsub.s32 0, %v147
  %v149 = vrot.slane %v144, %v148
  %v151 = vunpack.c.l.b16 %v149
  %v152 = vpack.c.b16 %v151, %v151
  %v154 = vmul.bf16 %v78, %v152
  %v155 = vmul.bf16 %v79, %v152
  %v156 = vmul.bf16 %v80, %v152
  %v157 = vmul.bf16 %v81, %v152
  %v158 = vmul.bf16 %v82, %v152
  %v159 = vmul.bf16 %v83, %v152
  %v160 = vmul.bf16 %v84, %v152
  %v161 = vmul.bf16 %v85, %v152
  %v162 = vadd.bf16 %v70, %v154
  %v163 = vadd.bf16 %v71, %v155
  %v164 = vadd.bf16 %v72, %v156
  %v165 = vadd.bf16 %v73, %v157
  %v166 = vadd.bf16 %v74, %v158
  %v167 = vadd.bf16 %v75, %v159
  %v168 = vadd.bf16 %v76, %v160
  %v169 = vadd.bf16 %v77, %v161
  %v170 = vld [vmem:[#allocation2] sm:$0xff]
  %v171 = vld [vmem:[#allocation2 + $0x8] sm:$0xff]
  %v172 = vld [vmem:[#allocation2 + $0x10] sm:$0xff]
  %v173 = vld [vmem:[#allocation2 + $0x18] sm:$0xff]
  %v174 = vld [vmem:[#allocation2 + $0x20] sm:$0xff]
  %v175 = vld [vmem:[#allocation2 + $0x28] sm:$0xff]
  %v176 = vld [vmem:[#allocation2 + $0x30] sm:$0xff]
  %v177 = vld [vmem:[#allocation2 + $0x38] sm:$0xff]
  %v178 = vld [vmem:[%s5] sm:$0xf]
  %v179 = vld [vmem:[%s5 + $0x4] sm:$0xf]
  %v180 = vld [vmem:[%s5 + $0x8] sm:$0xf]
  %v181 = vld [vmem:[%s5 + $0xc] sm:$0xf]
  %v190 = vunpack.c.l.b16 %v106
  %v191 = vunpack.c.l.b16 %v107
  %v192 = vunpack.c.l.b16 %v108
  %v193 = vunpack.c.l.b16 %v109
  %v194 = vunpack.c.l.b16 %v110
  %v195 = vunpack.c.l.b16 %v111
  %v196 = vunpack.c.l.b16 %v112
  %v197 = vunpack.c.l.b16 %v113
  %v198 = vpack.c.b16 %v191, %v190
  %v199 = vpack.c.b16 %v193, %v192
  %v200 = vpack.c.b16 %v195, %v194
  %v201 = vpack.c.b16 %v197, %v196
  %v206 = vunpack.c.l.b16 %v178
  %v207 = vunpack.c.l.b16 %v179
  %v208 = vunpack.c.l.b16 %v180
  %v209 = vunpack.c.l.b16 %v181
  %v210 = vpack.c.b16 %v207, %v206
  %v211 = vpack.c.b16 %v209, %v208
  %vm214 = vcmask 261120
  %v216 = vsel %vm214, %v198, 0
  %v219 = vsel %vm214, %v199, 0
  %v222 = vsel %vm214, %v200, 0
  %v225 = vsel %vm214, %v201, 0
  %227 = vmatprep.subr.bf16.mxu0 0
  %228 = vmatpush1.bf16.msra.mxu0 %v210
  %229 = vmatprep.subr.bf16.mxu0 0
  %230 = vmatpush1.bf16.msra.mxu0 %v211
  %231 = vmatprep.subr.bf16.mxu0 0
  %232 = vmatpush1.bf16.msra.mxu0 0
  %233 = vmatprep.subr.bf16.mxu0 0
  %234 = vmatpush1.bf16.msra.mxu0 0
  %235 = vmatprep.subr.bf16.mxu0 0
  %236 = vmatpush1.bf16.msra.mxu0 0
  %237 = vmatprep.subr.bf16.mxu0 0
  %238 = vmatpush1.bf16.msra.mxu0 0
  %239 = vmatprep.subr.bf16.mxu0 0
  %240 = vmatpush1.bf16.msra.mxu0 0
  %241 = vmatprep.subr.bf16.mxu0 0
  %242 = vmatpush1.bf16.msra.mxu0 0
  %243 = vmatprep.subr.bf16.mxu0 0
  %244 = vmatpush1.bf16.msra.mxu0 0
  %245 = vmatprep.subr.bf16.mxu0 0
  %246 = vmatpush1.bf16.msra.mxu0 0
  %247 = vmatprep.subr.bf16.mxu0 0
  %248 = vmatpush1.bf16.msra.mxu0 0
  %249 = vmatprep.subr.bf16.mxu0 0
  %250 = vmatpush1.bf16.msra.mxu0 0
  %251 = vmatprep.subr.bf16.mxu0 0
  %252 = vmatpush1.bf16.msra.mxu0 0
  %253 = vmatprep.subr.bf16.mxu0 0
  %254 = vmatpush1.bf16.msra.mxu0 0
  %255 = vmatprep.subr.bf16.mxu0 0
  %256 = vmatpush1.bf16.msra.mxu0 0
  %257 = vmatprep.subr.bf16.mxu0 0
  %258 = vmatpush1.bf16.msra.mxu0 0
  %259 = vmatprep.mubr.bf16.mxu0 0
  %260 = vmatmul.mubr.bf16.gmra.mrb[0].mxu0 %v216
  %v261 = vpop.f32.mrb[0].mxu0
  %v262 = vadd.f32 0.0, %v261
  %v263 = vpop.f32.mrb[0].mxu0
  %v264 = vpop.f32.mrb[0].mxu0
  %v265 = vadd.f32 0.0, %v264
  %v266 = vpop.f32.mrb[0].mxu0
  %267 = vmatprep.mubr.bf16.mxu0 0
  %268 = vmatmul.mubr.bf16.gmra.mrb[0].mxu0 %v219
  %v269 = vpop.f32.mrb[0].mxu0
  %v270 = vadd.f32 0.0, %v269
  %v271 = vpop.f32.mrb[0].mxu0
  %v272 = vpop.f32.mrb[0].mxu0
  %v273 = vadd.f32 0.0, %v272
  %v274 = vpop.f32.mrb[0].mxu0
  %275 = vmatprep.mubr.bf16.mxu0 0
  %276 = vmatmul.mubr.bf16.gmra.mrb[0].mxu0 %v222
  %v277 = vpop.f32.mrb[0].mxu0
  %v278 = vadd.f32 0.0, %v277
  %v279 = vpop.f32.mrb[0].mxu0
  %v280 = vpop.f32.mrb[0].mxu0
  %v281 = vadd.f32 0.0, %v280
  %v282 = vpop.f32.mrb[0].mxu0
  %283 = vmatprep.mubr.bf16.mxu0 0
  %284 = vmatmul.mubr.bf16.gmra.mrb[0].mxu0 %v225
  %v285 = vpop.f32.mrb[0].mxu0
  %v286 = vadd.f32 0.0, %v285
  %v287 = vpop.f32.mrb[0].mxu0
  %v288 = vpop.f32.mrb[0].mxu0
  %v289 = vadd.f32 0.0, %v288
  %v290 = vpop.f32.mrb[0].mxu0
  %291 = vdwg.mxu0
  %v292 = vadd.f32 %v170, %v262
  %v293 = vadd.f32 %v171, %v265
  %v294 = vadd.f32 %v172, %v270
  %v295 = vadd.f32 %v173, %v273
  %v296 = vadd.f32 %v174, %v278
  %v297 = vadd.f32 %v175, %v281
  %v298 = vadd.f32 %v176, %v286
  %v299 = vadd.f32 %v177, %v289
  %300 = vst.msk [vmem:[#allocation2] sm:$0xff] %vm214, %v292
  %301 = vst.msk [vmem:[#allocation2 + $0x8] sm:$0xff] %vm214, %v293
  %302 = vst.msk [vmem:[#allocation2 + $0x10] sm:$0xff] %vm214, %v294
  %303 = vst.msk [vmem:[#allocation2 + $0x18] sm:$0xff] %vm214, %v295
  %304 = vst.msk [vmem:[#allocation2 + $0x20] sm:$0xff] %vm214, %v296
  %305 = vst.msk [vmem:[#allocation2 + $0x28] sm:$0xff] %vm214, %v297
  %306 = vst.msk [vmem:[#allocation2 + $0x30] sm:$0xff] %vm214, %v298
  %307 = vst.msk [vmem:[#allocation2 + $0x38] sm:$0xff] %vm214, %v299
  %v308 = vld [vmem:[#allocation3] sm:$0xff]
  %v309 = vld [vmem:[#allocation3 + $0x8] sm:$0xff]
  %v310 = vld [vmem:[#allocation3 + $0x10] sm:$0xff]
  %v311 = vld [vmem:[#allocation3 + $0x18] sm:$0xff]
  %v312 = vld [vmem:[#allocation3 + $0x20] sm:$0xff]
  %v313 = vld [vmem:[#allocation3 + $0x28] sm:$0xff]
  %v314 = vld [vmem:[#allocation3 + $0x30] sm:$0xff]
  %v315 = vld [vmem:[#allocation3 + $0x38] sm:$0xff]
  %v316 = vld [vmem:[%s6] sm:$0xf]
  %v317 = vld [vmem:[%s6 + $0x4] sm:$0xf]
  %v318 = vld [vmem:[%s6 + $0x8] sm:$0xf]
  %v319 = vld [vmem:[%s6 + $0xc] sm:$0xf]
  %v328 = vunpack.c.l.b16 %v134
  %v329 = vunpack.c.l.b16 %v135
  %v330 = vunpack.c.l.b16 %v136
  %v331 = vunpack.c.l.b16 %v137
  %v332 = vunpack.c.l.b16 %v138
  %v333 = vunpack.c.l.b16 %v139
  %v334 = vunpack.c.l.b16 %v140
  %v335 = vunpack.c.l.b16 %v141
  %v336 = vpack.c.b16 %v329, %v328
  %v337 = vpack.c.b16 %v331, %v330
  %v338 = vpack.c.b16 %v333, %v332
  %v339 = vpack.c.b16 %v335, %v334
  %v344 = vunpack.c.l.b16 %v316
  %v345 = vunpack.c.l.b16 %v317
  %v346 = vunpack.c.l.b16 %v318
  %v347 = vunpack.c.l.b16 %v319
  %v348 = vpack.c.b16 %v345, %v344
  %v349 = vpack.c.b16 %v347, %v346
  %v353 = vsel %vm214, %v336, 0
  %v356 = vsel %vm214, %v337, 0
  %v359 = vsel %vm214, %v338, 0
  %v362 = vsel %vm214, %v339, 0
  %364 = vmatprep.subr.bf16.mxu0 0
  %365 = vmatpush1.bf16.msra.mxu0 %v348
  %366 = vmatprep.subr.bf16.mxu0 0
  %367 = vmatpush1.bf16.msra.mxu0 %v349
  %368 = vmatprep.subr.bf16.mxu0 0
  %369 = vmatpush1.bf16.msra.mxu0 0
  %370 = vmatprep.subr.bf16.mxu0 0
  %371 = vmatpush1.bf16.msra.mxu0 0
  %372 = vmatprep.subr.bf16.mxu0 0
  %373 = vmatpush1.bf16.msra.mxu0 0
  %374 = vmatprep.subr.bf16.mxu0 0
  %375 = vmatpush1.bf16.msra.mxu0 0
  %376 = vmatprep.subr.bf16.mxu0 0
  %377 = vmatpush1.bf16.msra.mxu0 0
  %378 = vmatprep.subr.bf16.mxu0 0
  %379 = vmatpush1.bf16.msra.mxu0 0
  %380 = vmatprep.subr.bf16.mxu0 0
  %381 = vmatpush1.bf16.msra.mxu0 0
  %382 = vmatprep.subr.bf16.mxu0 0
  %383 = vmatpush1.bf16.msra.mxu0 0
  %384 = vmatprep.subr.bf16.mxu0 0
  %385 = vmatpush1.bf16.msra.mxu0 0
  %386 = vmatprep.subr.bf16.mxu0 0
  %387 = vmatpush1.bf16.msra.mxu0 0
  %388 = vmatprep.subr.bf16.mxu0 0
  %389 = vmatpush1.bf16.msra.mxu0 0
  %390 = vmatprep.subr.bf16.mxu0 0
  %391 = vmatpush1.bf16.msra.mxu0 0
  %392 = vmatprep.subr.bf16.mxu0 0
  %393 = vmatpush1.bf16.msra.mxu0 0
  %394 = vmatprep.subr.bf16.mxu0 0
  %395 = vmatpush1.bf16.msra.mxu0 0
  %396 = vmatprep.mubr.bf16.mxu0 0
  %397 = vmatmul.mubr.bf16.gmra.mrb[0].mxu0 %v353
  %v398 = vpop.f32.mrb[0].mxu0
  %v399 = vadd.f32 0.0, %v398
  %v400 = vpop.f32.mrb[0].mxu0
  %v401 = vpop.f32.mrb[0].mxu0
  %v402 = vadd.f32 0.0, %v401
  %v403 = vpop.f32.mrb[0].mxu0
  %404 = vmatprep.mubr.bf16.mxu0 0
  %405 = vmatmul.mubr.bf16.gmra.mrb[0].mxu0 %v356
  %v406 = vpop.f32.mrb[0].mxu0
  %v407 = vadd.f32 0.0, %v406
  %v408 = vpop.f32.mrb[0].mxu0
  %v409 = vpop.f32.mrb[0].mxu0
  %v410 = vadd.f32 0.0, %v409
  %v411 = vpop.f32.mrb[0].mxu0
  %412 = vmatprep.mubr.bf16.mxu0 0
  %413 = vmatmul.mubr.bf16.gmra.mrb[0].mxu0 %v359
  %v414 = vpop.f32.mrb[0].mxu0
  %v415 = vadd.f32 0.0, %v414
  %v416 = vpop.f32.mrb[0].mxu0
  %v417 = vpop.f32.mrb[0].mxu0
  %v418 = vadd.f32 0.0, %v417
  %v419 = vpop.f32.mrb[0].mxu0
  %420 = vmatprep.mubr.bf16.mxu0 0
  %421 = vmatmul.mubr.bf16.gmra.mrb[0].mxu0 %v362
  %v422 = vpop.f32.mrb[0].mxu0
  %v423 = vadd.f32 0.0, %v422
  %v424 = vpop.f32.mrb[0].mxu0
  %v425 = vpop.f32.mrb[0].mxu0
  %v426 = vadd.f32 0.0, %v425
  %v427 = vpop.f32.mrb[0].mxu0
  %428 = vdwg.mxu0
  %v429 = vadd.f32 %v308, %v399
  %v430 = vadd.f32 %v309, %v402
  %v431 = vadd.f32 %v310, %v407
  %v432 = vadd.f32 %v311, %v410
  %v433 = vadd.f32 %v312, %v415
  %v434 = vadd.f32 %v313, %v418
  %v435 = vadd.f32 %v314, %v423
  %v436 = vadd.f32 %v315, %v426
  %437 = vst.msk [vmem:[#allocation3] sm:$0xff] %vm214, %v429
  %438 = vst.msk [vmem:[#allocation3 + $0x8] sm:$0xff] %vm214, %v430
  %439 = vst.msk [vmem:[#allocation3 + $0x10] sm:$0xff] %vm214, %v431
  %440 = vst.msk [vmem:[#allocation3 + $0x18] sm:$0xff] %vm214, %v432
  %441 = vst.msk [vmem:[#allocation3 + $0x20] sm:$0xff] %vm214, %v433
  %442 = vst.msk [vmem:[#allocation3 + $0x28] sm:$0xff] %vm214, %v434
  %443 = vst.msk [vmem:[#allocation3 + $0x30] sm:$0xff] %vm214, %v435
  %444 = vst.msk [vmem:[#allocation3 + $0x38] sm:$0xff] %vm214, %v436
  %v445 = vld [vmem:[#allocation4] sm:$0xff]
  %v446 = vld [vmem:[#allocation4 + $0x8] sm:$0xff]
  %v447 = vld [vmem:[#allocation4 + $0x10] sm:$0xff]
  %v448 = vld [vmem:[#allocation4 + $0x18] sm:$0xff]
  %v449 = vld [vmem:[#allocation4 + $0x20] sm:$0xff]
  %v450 = vld [vmem:[#allocation4 + $0x28] sm:$0xff]
  %v451 = vld [vmem:[#allocation4 + $0x30] sm:$0xff]
  %v452 = vld [vmem:[#allocation4 + $0x38] sm:$0xff]
  %v453 = vld [vmem:[%s7] sm:$0xf]
  %v454 = vld [vmem:[%s7 + $0x4] sm:$0xf]
  %v455 = vld [vmem:[%s7 + $0x8] sm:$0xf]
  %v456 = vld [vmem:[%s7 + $0xc] sm:$0xf]
  %v465 = vunpack.c.l.b16 %v162
  %v466 = vunpack.c.l.b16 %v163
  %v467 = vunpack.c.l.b16 %v164
  %v468 = vunpack.c.l.b16 %v165
  %v469 = vunpack.c.l.b16 %v166
  %v470 = vunpack.c.l.b16 %v167
  %v471 = vunpack.c.l.b16 %v168
  %v472 = vunpack.c.l.b16 %v169
  %v473 = vpack.c.b16 %v466, %v465
  %v474 = vpack.c.b16 %v468, %v467
  %v475 = vpack.c.b16 %v470, %v469
  %v476 = vpack.c.b16 %v472, %v471
  %v481 = vunpack.c.l.b16 %v453
  %v482 = vunpack.c.l.b16 %v454
  %v483 = vunpack.c.l.b16 %v455
  %v484 = vunpack.c.l.b16 %v456
  %v485 = vpack.c.b16 %v482, %v481
  %v486 = vpack.c.b16 %v484, %v483
  %v490 = vsel %vm214, %v473, 0
  %v493 = vsel %vm214, %v474, 0
  %v496 = vsel %vm214, %v475, 0
  %v499 = vsel %vm214, %v476, 0
  %501 = vmatprep.subr.bf16.mxu0 0
  %502 = vmatpush1.bf16.msra.mxu0 %v485
  %503 = vmatprep.subr.bf16.mxu0 0
  %504 = vmatpush1.bf16.msra.mxu0 %v486
  %505 = vmatprep.subr.bf16.mxu0 0
  %506 = vmatpush1.bf16.msra.mxu0 0
  %507 = vmatprep.subr.bf16.mxu0 0
  %508 = vmatpush1.bf16.msra.mxu0 0
  %509 = vmatprep.subr.bf16.mxu0 0
  %510 = vmatpush1.bf16.msra.mxu0 0
  %511 = vmatprep.subr.bf16.mxu0 0
  %512 = vmatpush1.bf16.msra.mxu0 0
  %513 = vmatprep.subr.bf16.mxu0 0
  %514 = vmatpush1.bf16.msra.mxu0 0
  %515 = vmatprep.subr.bf16.mxu0 0
  %516 = vmatpush1.bf16.msra.mxu0 0
  %517 = vmatprep.subr.bf16.mxu0 0
  %518 = vmatpush1.bf16.msra.mxu0 0
  %519 = vmatprep.subr.bf16.mxu0 0
  %520 = vmatpush1.bf16.msra.mxu0 0
  %521 = vmatprep.subr.bf16.mxu0 0
  %522 = vmatpush1.bf16.msra.mxu0 0
  %523 = vmatprep.subr.bf16.mxu0 0
  %524 = vmatpush1.bf16.msra.mxu0 0
  %525 = vmatprep.subr.bf16.mxu0 0
  %526 = vmatpush1.bf16.msra.mxu0 0
  %527 = vmatprep.subr.bf16.mxu0 0
  %528 = vmatpush1.bf16.msra.mxu0 0
  %529 = vmatprep.subr.bf16.mxu0 0
  %530 = vmatpush1.bf16.msra.mxu0 0
  %531 = vmatprep.subr.bf16.mxu0 0
  %532 = vmatpush1.bf16.msra.mxu0 0
  %533 = vmatprep.mubr.bf16.mxu0 0
  %534 = vmatmul.mubr.bf16.gmra.mrb[0].mxu0 %v490
  %v535 = vpop.f32.mrb[0].mxu0
  %v536 = vadd.f32 0.0, %v535
  %v537 = vpop.f32.mrb[0].mxu0
  %v538 = vpop.f32.mrb[0].mxu0
  %v539 = vadd.f32 0.0, %v538
  %v540 = vpop.f32.mrb[0].mxu0
  %541 = vmatprep.mubr.bf16.mxu0 0
  %542 = vmatmul.mubr.bf16.gmra.mrb[0].mxu0 %v493
  %v543 = vpop.f32.mrb[0].mxu0
  %v544 = vadd.f32 0.0, %v543
  %v545 = vpop.f32.mrb[0].mxu0
  %v546 = vpop.f32.mrb[0].mxu0
  %v547 = vadd.f32 0.0, %v546
  %v548 = vpop.f32.mrb[0].mxu0
  %549 = vmatprep.mubr.bf16.mxu0 0
  %550 = vmatmul.mubr.bf16.gmra.mrb[0].mxu0 %v496
  %v551 = vpop.f32.mrb[0].mxu0
  %v552 = vadd.f32 0.0, %v551
  %v553 = vpop.f32.mrb[0].mxu0
  %v554 = vpop.f32.mrb[0].mxu0
  %v555 = vadd.f32 0.0, %v554
  %v556 = vpop.f32.mrb[0].mxu0
  %557 = vmatprep.mubr.bf16.mxu0 0
  %558 = vmatmul.mubr.bf16.gmra.mrb[0].mxu0 %v499
  %v559 = vpop.f32.mrb[0].mxu0
  %v560 = vadd.f32 0.0, %v559
  %v561 = vpop.f32.mrb[0].mxu0
  %v562 = vpop.f32.mrb[0].mxu0
  %v563 = vadd.f32 0.0, %v562
  %v564 = vpop.f32.mrb[0].mxu0
  %565 = vdwg.mxu0
  %v566 = vadd.f32 %v445, %v536
  %v567 = vadd.f32 %v446, %v539
  %v568 = vadd.f32 %v447, %v544
  %v569 = vadd.f32 %v448, %v547
  %v570 = vadd.f32 %v449, %v552
  %v571 = vadd.f32 %v450, %v555
  %v572 = vadd.f32 %v451, %v560
  %v573 = vadd.f32 %v452, %v563
  %574 = vst.msk [vmem:[#allocation4] sm:$0xff] %vm214, %v566
  %575 = vst.msk [vmem:[#allocation4 + $0x8] sm:$0xff] %vm214, %v567
  %576 = vst.msk [vmem:[#allocation4 + $0x10] sm:$0xff] %vm214, %v568
  %577 = vst.msk [vmem:[#allocation4 + $0x18] sm:$0xff] %vm214, %v569
  %578 = vst.msk [vmem:[#allocation4 + $0x20] sm:$0xff] %vm214, %v570
  %579 = vst.msk [vmem:[#allocation4 + $0x28] sm:$0xff] %vm214, %v571
  %580 = vst.msk [vmem:[#allocation4 + $0x30] sm:$0xff] %vm214, %v572
  %581 = vst.msk [vmem:[#allocation4 + $0x38] sm:$0xff] %vm214, %v573
  // Predicated region
  $region38: #{rwkv_timemix_forward.3} parent=0 // pred_check
    %p582 = pneg %p33
  $region39: #{rwkv_timemix_forward.3} parent=0 // pred_check_branch
    %584 = sbr.rel (%p582) target = $region41
  $region40: #{rwkv_timemix_forward.3} parent=0 // pred_region
    %v585 = vld [vmem:[#allocation2] sm:$0xff]
    %v586 = vld [vmem:[#allocation2 + $0x8] sm:$0xff]
    %v587 = vld [vmem:[#allocation2 + $0x10] sm:$0xff]
    %v588 = vld [vmem:[#allocation2 + $0x18] sm:$0xff]
    %v589 = vld [vmem:[#allocation2 + $0x20] sm:$0xff]
    %v590 = vld [vmem:[#allocation2 + $0x28] sm:$0xff]
    %v591 = vld [vmem:[#allocation2 + $0x30] sm:$0xff]
    %v592 = vld [vmem:[#allocation2 + $0x38] sm:$0xff]
    %593 = vst.msk [vmem:[%s8] sm:$0xff] %vm214, %v585
    %594 = vst.msk [vmem:[%s8 + $0x8] sm:$0xff] %vm214, %v586
    %595 = vst.msk [vmem:[%s8 + $0x10] sm:$0xff] %vm214, %v587
    %596 = vst.msk [vmem:[%s8 + $0x18] sm:$0xff] %vm214, %v588
    %597 = vst.msk [vmem:[%s8 + $0x20] sm:$0xff] %vm214, %v589
    %598 = vst.msk [vmem:[%s8 + $0x28] sm:$0xff] %vm214, %v590
    %599 = vst.msk [vmem:[%s8 + $0x30] sm:$0xff] %vm214, %v591
    %600 = vst.msk [vmem:[%s8 + $0x38] sm:$0xff] %vm214, %v592
    %v601 = vld [vmem:[#allocation3] sm:$0xff]
    %v602 = vld [vmem:[#allocation3 + $0x8] sm:$0xff]
    %v603 = vld [vmem:[#allocation3 + $0x10] sm:$0xff]
    %v604 = vld [vmem:[#allocation3 + $0x18] sm:$0xff]
    %v605 = vld [vmem:[#allocation3 + $0x20] sm:$0xff]
    %v606 = vld [vmem:[#allocation3 + $0x28] sm:$0xff]
    %v607 = vld [vmem:[#allocation3 + $0x30] sm:$0xff]
    %v608 = vld [vmem:[#allocation3 + $0x38] sm:$0xff]
    %v609 = vpack.c.bf16 %v602, %v601
    %v610 = vpack.c.bf16 %v604, %v603
    %v611 = vpack.c.bf16 %v606, %v605
    %v612 = vpack.c.bf16 %v608, %v607
    %v617 = vunpack.c.l.b16 %v609
    %v618 = vunpack.c.h.b16 %v609
    %v619 = vunpack.c.l.b16 %v610
    %v620 = vunpack.c.h.b16 %v610
    %v621 = vunpack.c.l.b16 %v611
    %v622 = vunpack.c.h.b16 %v611
    %v623 = vunpack.c.l.b16 %v612
    %v624 = vunpack.c.h.b16 %v612
    %v625 = vpack.c.b16 %v617, %v617
    %v626 = vpack.c.b16 %v618, %v618
    %v627 = vpack.c.b16 %v619, %v619
    %v628 = vpack.c.b16 %v620, %v620
    %v629 = vpack.c.b16 %v621, %v621
    %v630 = vpack.c.b16 %v622, %v622
    %v631 = vpack.c.b16 %v623, %v623
    %v632 = vpack.c.b16 %v624, %v624
    %vm641 = vcmask 257024
    %642 = vst.msk [vmem:[%s9] sm:$0xf] %vm641, %v625
    %643 = vst.msk [vmem:[%s9 + $0x4] sm:$0xf] %vm641, %v626
    %644 = vst.msk [vmem:[%s9 + $0x8] sm:$0xf] %vm641, %v627
    %645 = vst.msk [vmem:[%s9 + $0xc] sm:$0xf] %vm641, %v628
    %646 = vst.msk [vmem:[%s9 + $0x10] sm:$0xf] %vm641, %v629
    %647 = vst.msk [vmem:[%s9 + $0x14] sm:$0xf] %vm641, %v630
    %648 = vst.msk [vmem:[%s9 + $0x18] sm:$0xf] %vm641, %v631
    %649 = vst.msk [vmem:[%s9 + $0x1c] sm:$0xf] %vm641, %v632
    %v650 = vld [vmem:[#allocation4] sm:$0xff]
    %v651 = vld [vmem:[#allocation4 + $0x8] sm:$0xff]
    %v652 = vld [vmem:[#allocation4 + $0x10] sm:$0xff]
    %v653 = vld [vmem:[#allocation4 + $0x18] sm:$0xff]
    %v654 = vld [vmem:[#allocation4 + $0x20] sm:$0xff]
    %v655 = vld [vmem:[#allocation4 + $0x28] sm:$0xff]
    %v656 = vld [vmem:[#allocation4 + $0x30] sm:$0xff]
    %v657 = vld [vmem:[#allocation4 + $0x38] sm:$0xff]
    %v658 = vxor.u32 %v650, 2147483648
    %v659 = vxor.u32 %v651, 2147483648
    %v660 = vxor.u32 %v652, 2147483648
    %v661 = vxor.u32 %v653, 2147483648
    %v662 = vxor.u32 %v654, 2147483648
    %v663 = vxor.u32 %v655, 2147483648
    %v664 = vxor.u32 %v656, 2147483648
    %v665 = vxor.u32 %v657, 2147483648
    %v666 = vmul.f32 %v658, 1.442695
    %v667 = vpow.pop %v666
    %v668 = vmul.f32 %v659, 1.442695
    %v669 = vpow.pop %v668
    %v670 = vmul.f32 %v660, 1.442695
    %v671 = vpow.pop %v670
    %v672 = vmul.f32 %v661, 1.442695
    %v673 = vpow.pop %v672
    %v674 = vmul.f32 %v662, 1.442695
    %v675 = vpow.pop %v674
    %v676 = vmul.f32 %v663, 1.442695
    %v677 = vpow.pop %v676
    %v678 = vmul.f32 %v664, 1.442695
    %v679 = vpow.pop %v678
    %v680 = vmul.f32 %v665, 1.442695
    %v681 = vpow.pop %v680
    %v682 = vadd.f32 %v667, 1.0
    %v683 = vadd.f32 %v669, 1.0
    %v684 = vadd.f32 %v671, 1.0
    %v685 = vadd.f32 %v673, 1.0
    %v686 = vadd.f32 %v675, 1.0
    %v687 = vadd.f32 %v677, 1.0
    %v688 = vadd.f32 %v679, 1.0
    %v689 = vadd.f32 %v681, 1.0
    %v690 = vrcp.pop %v682
    %v691 = vmul.f32 1.0, %v690
    %v692 = vrcp.pop %v683
    %v693 = vmul.f32 1.0, %v692
    %v694 = vrcp.pop %v684
    %v695 = vmul.f32 1.0, %v694
    %v696 = vrcp.pop %v685
    %v697 = vmul.f32 1.0, %v696
    %v698 = vrcp.pop %v686
    %v699 = vmul.f32 1.0, %v698
    %v700 = vrcp.pop %v687
    %v701 = vmul.f32 1.0, %v700
    %v702 = vrcp.pop %v688
    %v703 = vmul.f32 1.0, %v702
    %v704 = vrcp.pop %v689
    %v705 = vmul.f32 1.0, %v704
    %v706 = vpack.c.bf16 %v693, %v691
    %v707 = vpack.c.bf16 %v697, %v695
    %v708 = vpack.c.bf16 %v701, %v699
    %v709 = vpack.c.bf16 %v705, %v703
    %v714 = vunpack.c.l.b16 %v706
    %v715 = vunpack.c.h.b16 %v706
    %v716 = vunpack.c.l.b16 %v707
    %v717 = vunpack.c.h.b16 %v707
    %v718 = vunpack.c.l.b16 %v708
    %v719 = vunpack.c.h.b16 %v708
    %v720 = vunpack.c.l.b16 %v709
    %v721 = vunpack.c.h.b16 %v709
    %v722 = vpack.c.b16 %v714, %v714
    %v723 = vpack.c.b16 %v715, %v715
    %v724 = vpack.c.b16 %v716, %v716
    %v725 = vpack.c.b16 %v717, %v717
    %v726 = vpack.c.b16 %v718, %v718
    %v727 = vpack.c.b16 %v719, %v719
    %v728 = vpack.c.b16 %v720, %v720
    %v729 = vpack.c.b16 %v721, %v721
    %738 = vst.msk [vmem:[%s10] sm:$0xf] %vm641, %v722
    %739 = vst.msk [vmem:[%s10 + $0x4] sm:$0xf] %vm641, %v723
    %740 = vst.msk [vmem:[%s10 + $0x8] sm:$0xf] %vm641, %v724
    %741 = vst.msk [vmem:[%s10 + $0xc] sm:$0xf] %vm641, %v725
    %742 = vst.msk [vmem:[%s10 + $0x10] sm:$0xf] %vm641, %v726
    %743 = vst.msk [vmem:[%s10 + $0x14] sm:$0xf] %vm641, %v727
    %744 = vst.msk [vmem:[%s10 + $0x18] sm:$0xf] %vm641, %v728
    %745 = vst.msk [vmem:[%s10 + $0x1c] sm:$0xf] %vm641, %v729
  $region41: #{rwkv_timemix_forward.3} parent=0 // pred_fallthru
    _
  // Predicated region
  $region42: #{rwkv_timemix_forward.3} parent=0 // pred_check
    _
  $region43: #{rwkv_timemix_forward.3} parent=0 // pred_check_branch
    %747 = sbr.rel (0) target = $region45
  $region44: #{rwkv_timemix_forward.3} parent=0 // pred_region
    _
  $region45: #{rwkv_timemix_forward.3} parent=0 // pred_fallthru
    _
  // Predicated region
  $region46: #{rwkv_timemix_forward.3} parent=0 // pred_check
    _
  $region47: #{rwkv_timemix_forward.3} parent=0 // pred_check_branch
    %749 = sbr.rel (0) target = $region49
  $region48: #{rwkv_timemix_forward.3} parent=0 // pred_region
    _
  $region49: #{rwkv_timemix_forward.3} parent=0 // pred_fallthru
    _
  // Predicated region
  $region50: #{rwkv_timemix_forward.3} parent=0 // pred_check
    _
  $region51: #{rwkv_timemix_forward.3} parent=0 // pred_check_branch
    %751 = sbr.rel (0) target = $region53
  $region52: #{rwkv_timemix_forward.3} parent=0 // pred_region
    _
  $region53: #{rwkv_timemix_forward.3} parent=0 // pred_fallthru
    _
  // Predicated region
  $region54: #{rwkv_timemix_forward.3} parent=0 // pred_check
    _
  $region55: #{rwkv_timemix_forward.3} parent=0 // pred_check_branch
    %753 = sbr.rel (0) target = $region57
  $region56: #{rwkv_timemix_forward.3} parent=0 // pred_region
    _
  $region57: #{rwkv_timemix_forward.3} parent=0 // pred_fallthru
    _
  // Predicated region
  $region58: #{rwkv_timemix_forward.3} parent=0 // pred_check
    _
  $region59: #{rwkv_timemix_forward.3} parent=0 // pred_check_branch
    %755 = sbr.rel (0) target = $region61
  $region60: #{rwkv_timemix_forward.3} parent=0 // pred_region
    _
  $region61: #{rwkv_timemix_forward.3} parent=0 // pred_fallthru
    _
  // Predicated region
  $region62: #{rwkv_timemix_forward.3} parent=0 // pred_check
    _
  $region63: #{rwkv_timemix_forward.3} parent=0 // pred_check_branch
    %757 = sbr.rel (0) target = $region65
  $region64: #{rwkv_timemix_forward.3} parent=0 // pred_region
    _
  $region65: #{rwkv_timemix_forward.3} parent=0 // pred_fallthru
    _

</llo_original>
